<compile_context>
chip_gen: v7x
topology: tpu7x:2x2x1
jax: 0.10.0
libtpu: 0.0.40
codegen_flags: <defaults>
</compile_context>

<pallas_src>
import functools

import jax
import jax.numpy as jnp
from jax.experimental import pallas as pl
from jax.experimental.pallas import tpu as pltpu

_LANES = 128


def _round_up(x, m):
    return -(-x // m) * m


def _sepconv_kernel(x_hbm, dw_ref, pwt_ref, bias_ref, out_ref, xbuf, sem, *,
                    kh, kw, stride, dilation, tile_rows, rows_in, w_out,
                    cin_p, cout_p, cdtype):
    """One (batch, row-tile) grid step.

    x_hbm:    (N, Hp, Wp, Cin_p)        padded input, left in HBM (pl.ANY)
    dw_ref:   (kh, kw, Cin_p)           depthwise weights, BN scale folded in (f32)
    pwt_ref:  (Cin_p, Cout_p)           pointwise weights (input dtype -> MXU)
    bias_ref: (1, Cout_p)               folded BN shift projected through pointwise (f32)
    out_ref:  (1, tile_rows, w_out, Cout_p)
    xbuf:     (1, rows_in, Wp, Cin_p)   VMEM scratch for this tile's input rows
    sem:      DMA semaphore
    """
    b = pl.program_id(0)
    t = pl.program_id(1)
    row0 = t * (tile_rows * stride)

    # Manual DMA of just this tile's input rows (+ (k_eff-1)-row halo) HBM -> VMEM.
    # TODO(synk): double-buffer this copy across grid steps (P4) so the input DMA
    # overlaps compute; the per-step copy keeps the kernel simple and shape-robust.
    copy = pltpu.make_async_copy(
        x_hbm.at[pl.ds(b, 1), pl.ds(row0, rows_in)], xbuf, sem.at[0])
    copy.start()
    copy.wait()

    xf = xbuf[0].astype(jnp.float32)      # (rows_in, Wp, Cin_p); cast hoisted out of the tap loop
    dwf = dw_ref[...]                     # (kh, kw, Cin_p), f32, BN scale pre-folded

    w_dense = (w_out - 1) * stride + 1    # dense output columns before the final W subsample
    h_span = (tile_rows - 1) * stride + 1

    acc = jnp.zeros((tile_rows, w_dense, cin_p), jnp.float32)
    for j in range(kw):
        c0 = j * dilation
        # One sublane-shifted view per kernel column (kw total, not kh*kw).
        xj = xf[:, c0:c0 + w_dense, :]
        for i in range(kh):
            r0 = i * dilation
            # Row shift + row stride live on the leading (untiled) axis: cheap.
            acc = acc + xj[r0:r0 + h_span:stride] * dwf[i, j]
    if stride > 1:
        acc = acc[:, ::stride, :]         # subsample W once at the end (not per tap)

    # Pointwise 1x1 conv == matmul over channels on the MXU; operands in input dtype.
    a2d = acc.reshape(tile_rows * w_out, cin_p).astype(cdtype)
    y = jnp.dot(a2d, pwt_ref[...], preferred_element_type=jnp.float32)
    y = y + bias_ref[...]                 # folded-BN bias, lane-dense (1, Cout_p)
    out_ref[0] = y.reshape(tile_rows, w_out, cout_p).astype(out_ref.dtype)


def separable_conv2d(x_nchw, dw_weight, pw_weight, gamma, beta,
                     running_mean, running_var, *, kernel_size=3, stride=1,
                     dilation=1, eps=1e-5, tile_rows=None):
    """Forward pass of SeparableConv2d (inference-mode BatchNorm).

    x_nchw:    (N, Cin, H, W)
    dw_weight: (Cin, 1, k, k)     depthwise conv weight (groups=Cin, bias=False)
    pw_weight: (Cout, Cin, 1, 1)  pointwise conv weight (bias=False)
    gamma/beta/running_mean/running_var: (Cin,) BN parameters (eval mode)
    """
    n, cin, h, w = x_nchw.shape
    cout = pw_weight.shape[0]
    k = kernel_size
    cdtype = x_nchw.dtype
    itemsize = jnp.dtype(cdtype).itemsize

    # fix_padding (same arithmetic as the PyTorch module).
    k_eff = k + (k - 1) * (dilation - 1)
    pad_total = k_eff - 1
    pad_beg = pad_total // 2
    pad_end = pad_total - pad_beg
    hp = h + pad_total
    wp = w + pad_total
    h_out = (hp - k_eff) // stride + 1
    w_out = (wp - k_eff) // stride + 1

    # Lane-dense channel padding (no-op for Xception-scale channel counts).
    cin_p = _round_up(cin, _LANES)
    cout_p = _round_up(cout, _LANES)

    # Row-tile size: biggest tile that keeps the per-step VMEM footprint modest.
    if tile_rows is None:
        bytes_per_out_row = (wp * cin_p * (itemsize + 4) * stride
                             + w_out * (cin_p * 4 + 2 * cout_p * itemsize))
        tile_rows = max(8, (8 * 1024 * 1024) // max(bytes_per_out_row, 1))
    tile_rows = int(max(1, min(tile_rows, h_out)))
    n_tiles = -(-h_out // tile_rows)
    rows_in = (tile_rows - 1) * stride + k_eff             # input rows per tile (incl. halo)
    hp_ext = (n_tiles * tile_rows - 1) * stride + k_eff    # padded rows covering all tiles
    pad_end_h = max(hp_ext - (h + pad_beg), 0)
    hp_pad = h + pad_beg + pad_end_h

    # NCHW -> NHWC, spatial pad and channel pad in a single fused XLA copy.
    # TODO(synk): keep activations NHWC end-to-end in the model to drop this
    # transpose/pad HBM pass (and the output transpose below) entirely.
    x_nhwc = jnp.transpose(x_nchw, (0, 2, 3, 1))
    xp = jnp.pad(x_nhwc, ((0, 0), (pad_beg, pad_end_h), (pad_beg, pad_end),
                          (0, cin_p - cin)))

    # Fold BN (eval mode) into the weights:
    #   PW(BN(DW(x))) = DW_{w*scale}(x) @ pwt + (shift @ pwt)
    scale = gamma / jnp.sqrt(running_var + eps)                           # (Cin,)
    shift = beta - running_mean * scale                                   # (Cin,)
    dw = jnp.transpose(dw_weight.reshape(cin, k, k), (1, 2, 0)) * scale   # (k, k, Cin)
    pwt = pw_weight.reshape(cout, cin).T                                  # (Cin, Cout)
    bias = shift @ pwt                                                    # (Cout,)

    dw_p = jnp.pad(dw, ((0, 0), (0, 0), (0, cin_p - cin))).astype(jnp.float32)
    pwt_p = jnp.pad(pwt, ((0, cin_p - cin), (0, cout_p - cout))).astype(cdtype)
    bias_p = jnp.pad(bias, (0, cout_p - cout)).reshape(1, cout_p).astype(jnp.float32)

    kern = functools.partial(
        _sepconv_kernel, kh=k, kw=k, stride=stride, dilation=dilation,
        tile_rows=tile_rows, rows_in=rows_in, w_out=w_out,
        cin_p=cin_p, cout_p=cout_p, cdtype=cdtype)

    # Advisory cost estimate + explicit VMEM ceiling for the compiler.
    flops = 2 * n * n_tiles * tile_rows * w_out * cin_p * (k * k + cout_p)
    bytes_accessed = (n * hp_pad * wp * cin_p * itemsize
                      + n * n_tiles * tile_rows * w_out * cout_p * itemsize
                      + dw_p.size * 4 + pwt_p.size * itemsize + bias_p.size * 4)
    w_dense = (w_out - 1) * stride + 1
    vmem_est = (rows_in * wp * cin_p * (itemsize + 4)
                + tile_rows * w_dense * cin_p * 4
                + 2 * tile_rows * w_out * cout_p * itemsize
                + 2 * (dw_p.size * 4 + pwt_p.size * itemsize + bias_p.size * 4))
    vmem_limit = int(min(max(2 * vmem_est, 32 * 1024 * 1024), 64 * 1024 * 1024))

    out = pl.pallas_call(
        kern,
        out_shape=jax.ShapeDtypeStruct((n, n_tiles * tile_rows, w_out, cout_p), cdtype),
        grid_spec=pltpu.PrefetchScalarGridSpec(
            num_scalar_prefetch=0,
            grid=(n, n_tiles),
            in_specs=[
                pl.BlockSpec(memory_space=pl.ANY),                    # x: stays in HBM
                pl.BlockSpec((k, k, cin_p), lambda b, t: (0, 0, 0)),  # resident weights
                pl.BlockSpec((cin_p, cout_p), lambda b, t: (0, 0)),
                pl.BlockSpec((1, cout_p), lambda b, t: (0, 0)),
            ],
            out_specs=pl.BlockSpec((1, tile_rows, w_out, cout_p),
                                   lambda b, t: (b, t, 0, 0)),
            scratch_shapes=[
                pltpu.VMEM((1, rows_in, wp, cin_p), cdtype),
                pltpu.SemaphoreType.DMA((1,)),
            ],
        ),
        compiler_params=pltpu.CompilerParams(
            dimension_semantics=("parallel", "parallel"),
            vmem_limit_bytes=vmem_limit,
        ),
        cost_estimate=pl.CostEstimate(flops=flops, transcendentals=0,
                                      bytes_accessed=bytes_accessed),
    )(xp, dw_p, pwt_p, bias_p)

    # Drop row / channel padding and go back to NCHW.
    out = out[:, :h_out, :, :cout]
    return jnp.transpose(out, (0, 3, 1, 2))


def _reference(x, dw_weight, pw_weight, gamma, beta, rmean, rvar,
               *, kernel_size, stride, dilation, eps=1e-5):
    k = kernel_size
    k_eff = k + (k - 1) * (dilation - 1)
    pad_total = k_eff - 1
    pb, pe = pad_total // 2, pad_total - pad_total // 2
    xp = jnp.pad(x, ((0, 0), (0, 0), (pb, pe), (pb, pe)))
    y = jax.lax.conv_general_dilated(
        xp, dw_weight, (stride, stride), 'VALID',
        rhs_dilation=(dilation, dilation),
        feature_group_count=x.shape[1],
        dimension_numbers=('NCHW', 'OIHW', 'NCHW'))
    scale = gamma / jnp.sqrt(rvar + eps)
    shift = beta - rmean * scale
    y = y * scale[None, :, None, None] + shift[None, :, None, None]
    y = jax.lax.conv_general_dilated(
        y, pw_weight, (1, 1), 'VALID',
        dimension_numbers=('NCHW', 'OIHW', 'NCHW'))
    return y


if __name__ == "__main__":
    key = jax.random.PRNGKey(0)
    k_x, k_dw, k_pw, k_g, k_b, k_m, k_v = jax.random.split(key, 7)

    N, Cin, H, W = 2, 4, 16, 16
    Cout, K = 8, 3

    x = jax.random.normal(k_x, (N, Cin, H, W), jnp.float32)
    dw_weight = jax.random.normal(k_dw, (Cin, 1, K, K), jnp.float32) * 0.1
    pw_weight = jax.random.normal(k_pw, (Cout, Cin, 1, 1), jnp.float32) * 0.1
    gamma = 1.0 + 0.1 * jax.random.normal(k_g, (Cin,), jnp.float32)
    beta = 0.1 * jax.random.normal(k_b, (Cin,), jnp.float32)
    running_mean = 0.1 * jax.random.normal(k_m, (Cin,), jnp.float32)
    running_var = jnp.abs(jax.random.normal(k_v, (Cin,), jnp.float32)) + 0.5

    # Config 1: dilation=1, 2 even row tiles of 8.
    # Config 2: dilation=2, 3 uneven row tiles of 6 (exercises halo + remainder padding).
    for dil, trows in ((1, 8), (2, 6)):
        out = separable_conv2d(x, dw_weight, pw_weight, gamma, beta,
                               running_mean, running_var,
                               kernel_size=K, stride=1, dilation=dil,
                               tile_rows=trows)
        out = jax.block_until_ready(out)
        ref = _reference(x, dw_weight, pw_weight, gamma, beta,
                         running_mean, running_var,
                         kernel_size=K, stride=1, dilation=dil)
        assert out.shape == (N, Cout, H, W), out.shape
        err = float(jnp.max(jnp.abs(out - ref)))
        assert jnp.allclose(out, ref, atol=3e-4, rtol=3e-4), (dil, err)

    print("KERNEL_OK")
</pallas_src>

<mosaic_0001>
module attributes {stable_mosaic.version = 11 : i64} {
  func.func @_sepconv_kernel(%arg0: i32, %arg1: i32, %arg2: memref<2x18x18x128xf32, #tpu.memory_space<any>>, %arg3: memref<3x3x128xf32, #tpu.memory_space<vmem>>, %arg4: memref<128x128xf32, #tpu.memory_space<vmem>>, %arg5: memref<1x128xf32, #tpu.memory_space<vmem>>, %arg6: memref<1x8x16x128xf32, #tpu.memory_space<vmem>>, %arg7: memref<1x10x18x128xf32, #tpu.memory_space<vmem>>, %arg8: memref<1x!tpu.dma_semaphore, #tpu.memory_space<semaphore_mem>>) attributes {dimension_semantics = [#tpu.dimension_semantics<parallel>, #tpu.dimension_semantics<parallel>], iteration_bounds = array<i64: 2, 2>, scalar_prefetch = 0 : i64, scratch_operands = 2 : i64, tpu.core_type = #tpu.core_type<tc>, window_params = [{}, {pipeline_mode = #tpu.pipeline_mode<synchronous>, transform_indices = @transform_1, window_bounds = array<i64: 3, 3, 128>}, {pipeline_mode = #tpu.pipeline_mode<synchronous>, transform_indices = @transform_2, window_bounds = array<i64: 128, 128>}, {pipeline_mode = #tpu.pipeline_mode<synchronous>, transform_indices = @transform_3, window_bounds = array<i64: 1, 128>}, {transform_indices = @transform_4, window_bounds = array<i64: 1, 8, 16, 128>}]} {
    %c8_i32 = arith.constant 8 : i32
    %0 = arith.muli %arg1, %c8_i32 : i32
    %c0_i32 = arith.constant 0 : i32
    %c0_i32_0 = arith.constant 0 : i32
    %c0_i32_1 = arith.constant 0 : i32
    %1 = tpu.memref_slice %arg2[%arg0, %0, %c0_i32_0, %c0_i32_1] : memref<2x18x18x128xf32, #tpu.memory_space<any>> -> memref<1x10x18x128xf32, #tpu.memory_space<any>>
    %2 = tpu.memref_slice %arg8[%c0_i32] : memref<1x!tpu.dma_semaphore, #tpu.memory_space<semaphore_mem>> -> memref<1x!tpu.dma_semaphore, #tpu.memory_space<semaphore_mem>>
    %3 = tpu.memref_squeeze %2 : memref<1x!tpu.dma_semaphore, #tpu.memory_space<semaphore_mem>> -> memref<!tpu.dma_semaphore, #tpu.memory_space<semaphore_mem>>
    tpu.enqueue_dma source(%1 : memref<1x10x18x128xf32, #tpu.memory_space<any>>) target(%arg7 : memref<1x10x18x128xf32, #tpu.memory_space<vmem>>) target_semaphore(%3 : memref<!tpu.dma_semaphore, #tpu.memory_space<semaphore_mem>>)
    %c0_i32_2 = arith.constant 0 : i32
    %c0_i32_3 = arith.constant 0 : i32
    %c0_i32_4 = arith.constant 0 : i32
    %4 = tpu.memref_slice %arg2[%arg0, %0, %c0_i32_3, %c0_i32_4] : memref<2x18x18x128xf32, #tpu.memory_space<any>> -> memref<1x10x18x128xf32, #tpu.memory_space<any>>
    %5 = tpu.memref_slice %arg8[%c0_i32_2] : memref<1x!tpu.dma_semaphore, #tpu.memory_space<semaphore_mem>> -> memref<1x!tpu.dma_semaphore, #tpu.memory_space<semaphore_mem>>
    %6 = tpu.memref_squeeze %5 : memref<1x!tpu.dma_semaphore, #tpu.memory_space<semaphore_mem>> -> memref<!tpu.dma_semaphore, #tpu.memory_space<semaphore_mem>>
    tpu.wait_dma2 semaphore(%6 : memref<!tpu.dma_semaphore, #tpu.memory_space<semaphore_mem>>) src(%4 : memref<1x10x18x128xf32, #tpu.memory_space<any>>) dst(%arg7 : memref<1x10x18x128xf32, #tpu.memory_space<vmem>>)
    %c0 = arith.constant 0 : index
    %c0_5 = arith.constant 0 : index
    %c0_6 = arith.constant 0 : index
    %c0_7 = arith.constant 0 : index
    %7 = vector.load %arg7[%c0, %c0_5, %c0_6, %c0_7] : memref<1x10x18x128xf32, #tpu.memory_space<vmem>>, vector<1x10x18x128xf32>
    %8 = vector.shape_cast %7 : vector<1x10x18x128xf32> to vector<10x18x128xf32>
    %c0_8 = arith.constant 0 : index
    %c0_9 = arith.constant 0 : index
    %c0_10 = arith.constant 0 : index
    %9 = vector.load %arg3[%c0_8, %c0_9, %c0_10] : memref<3x3x128xf32, #tpu.memory_space<vmem>>, vector<3x3x128xf32>
    %cst = arith.constant 0.000000e+00 : f32
    %10 = vector.broadcast %cst : f32 to vector<8x16x128xf32>
    %11 = vector.extract_strided_slice %8 {offsets = [0, 0, 0], sizes = [10, 16, 128], strides = [1, 1, 1]} : vector<10x18x128xf32> to vector<10x16x128xf32>
    %12 = vector.extract_strided_slice %11 {offsets = [0, 0, 0], sizes = [8, 16, 128], strides = [1, 1, 1]} : vector<10x16x128xf32> to vector<8x16x128xf32>
    %13 = vector.extract_strided_slice %9 {offsets = [0, 0, 0], sizes = [1, 1, 128], strides = [1, 1, 1]} : vector<3x3x128xf32> to vector<1x1x128xf32>
    %14 = vector.shape_cast %13 : vector<1x1x128xf32> to vector<128xf32>
    %15 = vector.shape_cast %14 : vector<128xf32> to vector<1x1x128xf32>
    %16 = vector.broadcast %15 : vector<1x1x128xf32> to vector<8x16x128xf32>
    %17 = arith.mulf %12, %16 : vector<8x16x128xf32>
    %18 = arith.addf %10, %17 : vector<8x16x128xf32>
    %19 = vector.extract_strided_slice %11 {offsets = [1, 0, 0], sizes = [8, 16, 128], strides = [1, 1, 1]} : vector<10x16x128xf32> to vector<8x16x128xf32>
    %20 = vector.extract_strided_slice %9 {offsets = [1, 0, 0], sizes = [1, 1, 128], strides = [1, 1, 1]} : vector<3x3x128xf32> to vector<1x1x128xf32>
    %21 = vector.shape_cast %20 : vector<1x1x128xf32> to vector<128xf32>
    %22 = vector.shape_cast %21 : vector<128xf32> to vector<1x1x128xf32>
    %23 = vector.broadcast %22 : vector<1x1x128xf32> to vector<8x16x128xf32>
    %24 = arith.mulf %19, %23 : vector<8x16x128xf32>
    %25 = arith.addf %18, %24 : vector<8x16x128xf32>
    %26 = vector.extract_strided_slice %11 {offsets = [2, 0, 0], sizes = [8, 16, 128], strides = [1, 1, 1]} : vector<10x16x128xf32> to vector<8x16x128xf32>
    %27 = vector.extract_strided_slice %9 {offsets = [2, 0, 0], sizes = [1, 1, 128], strides = [1, 1, 1]} : vector<3x3x128xf32> to vector<1x1x128xf32>
    %28 = vector.shape_cast %27 : vector<1x1x128xf32> to vector<128xf32>
    %29 = vector.shape_cast %28 : vector<128xf32> to vector<1x1x128xf32>
    %30 = vector.broadcast %29 : vector<1x1x128xf32> to vector<8x16x128xf32>
    %31 = arith.mulf %26, %30 : vector<8x16x128xf32>
    %32 = arith.addf %25, %31 : vector<8x16x128xf32>
    %33 = vector.extract_strided_slice %8 {offsets = [0, 1, 0], sizes = [10, 16, 128], strides = [1, 1, 1]} : vector<10x18x128xf32> to vector<10x16x128xf32>
    %34 = vector.extract_strided_slice %33 {offsets = [0, 0, 0], sizes = [8, 16, 128], strides = [1, 1, 1]} : vector<10x16x128xf32> to vector<8x16x128xf32>
    %35 = vector.extract_strided_slice %9 {offsets = [0, 1, 0], sizes = [1, 1, 128], strides = [1, 1, 1]} : vector<3x3x128xf32> to vector<1x1x128xf32>
    %36 = vector.shape_cast %35 : vector<1x1x128xf32> to vector<128xf32>
    %37 = vector.shape_cast %36 : vector<128xf32> to vector<1x1x128xf32>
    %38 = vector.broadcast %37 : vector<1x1x128xf32> to vector<8x16x128xf32>
    %39 = arith.mulf %34, %38 : vector<8x16x128xf32>
    %40 = arith.addf %32, %39 : vector<8x16x128xf32>
    %41 = vector.extract_strided_slice %33 {offsets = [1, 0, 0], sizes = [8, 16, 128], strides = [1, 1, 1]} : vector<10x16x128xf32> to vector<8x16x128xf32>
    %42 = vector.extract_strided_slice %9 {offsets = [1, 1, 0], sizes = [1, 1, 128], strides = [1, 1, 1]} : vector<3x3x128xf32> to vector<1x1x128xf32>
    %43 = vector.shape_cast %42 : vector<1x1x128xf32> to vector<128xf32>
    %44 = vector.shape_cast %43 : vector<128xf32> to vector<1x1x128xf32>
    %45 = vector.broadcast %44 : vector<1x1x128xf32> to vector<8x16x128xf32>
    %46 = arith.mulf %41, %45 : vector<8x16x128xf32>
    %47 = arith.addf %40, %46 : vector<8x16x128xf32>
    %48 = vector.extract_strided_slice %33 {offsets = [2, 0, 0], sizes = [8, 16, 128], strides = [1, 1, 1]} : vector<10x16x128xf32> to vector<8x16x128xf32>
    %49 = vector.extract_strided_slice %9 {offsets = [2, 1, 0], sizes = [1, 1, 128], strides = [1, 1, 1]} : vector<3x3x128xf32> to vector<1x1x128xf32>
    %50 = vector.shape_cast %49 : vector<1x1x128xf32> to vector<128xf32>
    %51 = vector.shape_cast %50 : vector<128xf32> to vector<1x1x128xf32>
    %52 = vector.broadcast %51 : vector<1x1x128xf32> to vector<8x16x128xf32>
    %53 = arith.mulf %48, %52 : vector<8x16x128xf32>
    %54 = arith.addf %47, %53 : vector<8x16x128xf32>
    %55 = vector.extract_strided_slice %8 {offsets = [0, 2, 0], sizes = [10, 16, 128], strides = [1, 1, 1]} : vector<10x18x128xf32> to vector<10x16x128xf32>
    %56 = vector.extract_strided_slice %55 {offsets = [0, 0, 0], sizes = [8, 16, 128], strides = [1, 1, 1]} : vector<10x16x128xf32> to vector<8x16x128xf32>
    %57 = vector.extract_strided_slice %9 {offsets = [0, 2, 0], sizes = [1, 1, 128], strides = [1, 1, 1]} : vector<3x3x128xf32> to vector<1x1x128xf32>
    %58 = vector.shape_cast %57 : vector<1x1x128xf32> to vector<128xf32>
    %59 = vector.shape_cast %58 : vector<128xf32> to vector<1x1x128xf32>
    %60 = vector.broadcast %59 : vector<1x1x128xf32> to vector<8x16x128xf32>
    %61 = arith.mulf %56, %60 : vector<8x16x128xf32>
    %62 = arith.addf %54, %61 : vector<8x16x128xf32>
    %63 = vector.extract_strided_slice %55 {offsets = [1, 0, 0], sizes = [8, 16, 128], strides = [1, 1, 1]} : vector<10x16x128xf32> to vector<8x16x128xf32>
    %64 = vector.extract_strided_slice %9 {offsets = [1, 2, 0], sizes = [1, 1, 128], strides = [1, 1, 1]} : vector<3x3x128xf32> to vector<1x1x128xf32>
    %65 = vector.shape_cast %64 : vector<1x1x128xf32> to vector<128xf32>
    %66 = vector.shape_cast %65 : vector<128xf32> to vector<1x1x128xf32>
    %67 = vector.broadcast %66 : vector<1x1x128xf32> to vector<8x16x128xf32>
    %68 = arith.mulf %63, %67 : vector<8x16x128xf32>
    %69 = arith.addf %62, %68 : vector<8x16x128xf32>
    %70 = vector.extract_strided_slice %55 {offsets = [2, 0, 0], sizes = [8, 16, 128], strides = [1, 1, 1]} : vector<10x16x128xf32> to vector<8x16x128xf32>
    %71 = vector.extract_strided_slice %9 {offsets = [2, 2, 0], sizes = [1, 1, 128], strides = [1, 1, 1]} : vector<3x3x128xf32> to vector<1x1x128xf32>
    %72 = vector.shape_cast %71 : vector<1x1x128xf32> to vector<128xf32>
    %73 = vector.shape_cast %72 : vector<128xf32> to vector<1x1x128xf32>
    %74 = vector.broadcast %73 : vector<1x1x128xf32> to vector<8x16x128xf32>
    %75 = arith.mulf %70, %74 : vector<8x16x128xf32>
    %76 = arith.addf %69, %75 : vector<8x16x128xf32>
    %77 = vector.shape_cast %76 : vector<8x16x128xf32> to vector<128x128xf32>
    %c0_11 = arith.constant 0 : index
    %c0_12 = arith.constant 0 : index
    %78 = vector.load %arg4[%c0_11, %c0_12] : memref<128x128xf32, #tpu.memory_space<vmem>>, vector<128x128xf32>
    %cst_13 = arith.constant dense<0.000000e+00> : vector<128x128xf32>
    %79 = tpu.matmul %77, %78, %cst_13 {dimension_numbers = #tpu.dot_dimension_numbers<[1], [0], [0], [1], [0, 0, 1, 1], [], []>} : vector<128x128xf32>, vector<128x128xf32>, vector<128x128xf32> -> vector<128x128xf32>
    %c0_14 = arith.constant 0 : index
    %c0_15 = arith.constant 0 : index
    %80 = vector.load %arg5[%c0_14, %c0_15] : memref<1x128xf32, #tpu.memory_space<vmem>>, vector<1x128xf32>
    %81 = vector.broadcast %80 : vector<1x128xf32> to vector<128x128xf32>
    %82 = arith.addf %79, %81 : vector<128x128xf32>
    %83 = vector.shape_cast %82 : vector<128x128xf32> to vector<8x16x128xf32>
    %c0_16 = arith.constant 0 : index
    %c0_17 = arith.constant 0 : index
    %c0_18 = arith.constant 0 : index
    %c0_19 = arith.constant 0 : index
    %84 = vector.load %arg6[%c0_16, %c0_17, %c0_18, %c0_19] : memref<1x8x16x128xf32, #tpu.memory_space<vmem>>, vector<1x8x16x128xf32>
    %85 = vector.shape_cast %84 : vector<1x8x16x128xf32> to vector<8x16x128xf32>
    %86 = vector.shape_cast %83 : vector<8x16x128xf32> to vector<1x8x16x128xf32>
    tpu.vector_store %arg6[%c0_16, %c0_17, %c0_18, %c0_19], %86 {strides = array<i32>} : memref<1x8x16x128xf32, #tpu.memory_space<vmem>>, vector<1x8x16x128xf32>,
    return
  }
  func.func @transform_1(%arg0: i32, %arg1: i32) -> (i32, i32, i32) {
    %c0_i32 = arith.constant 0 : i32
    %c0_i32_0 = arith.constant 0 : i32
    %c0_i32_1 = arith.constant 0 : i32
    %c0_i32_2 = arith.constant 0 : i32
    return %c0_i32, %c0_i32_0, %c0_i32_1 : i32, i32, i32
  }
  func.func @transform_2(%arg0: i32, %arg1: i32) -> (i32, i32) {
    %c0_i32 = arith.constant 0 : i32
    %c0_i32_0 = arith.constant 0 : i32
    %c0_i32_1 = arith.constant 0 : i32
    return %c0_i32, %c0_i32_0 : i32, i32
  }
  func.func @transform_3(%arg0: i32, %arg1: i32) -> (i32, i32) {
    %c0_i32 = arith.constant 0 : i32
    %c0_i32_0 = arith.constant 0 : i32
    %c0_i32_1 = arith.constant 0 : i32
    return %c0_i32, %c0_i32_0 : i32, i32
  }
  func.func @transform_4(%arg0: i32, %arg1: i32) -> (i32, i32, i32, i32) {
    %c0_i32 = arith.constant 0 : i32
    %c0_i32_0 = arith.constant 0 : i32
    %c0_i32_1 = arith.constant 0 : i32
    return %arg0, %arg1, %c0_i32, %c0_i32_0 : i32, i32, i32, i32
  }
}

</mosaic_0001>

<llo_original>
// kernel: tpu_custom_call.1
$region0: #{tpu_custom_call.1}
  #allocation0 [shape = 'u32[]', space=smem, size = 0x4, offset = 0x4, fixed_abs, tag = 'smem constant byte address 0x4 - core index']
  #allocation1 [shape = 'u32[144,128]{1,0:T(1,128)}', space=vmem, size = 0x12000, scoped, tag = 'internal scratch']
  #allocation2 [shape = 'f32[1,10,18,128]{3,2,1,0:T(8,128)}', space=vmem, size = 0x1e000, scoped, tag = 'scratch operand']
  #allocation3 [shape = 's32[1]{0}', space=sflag, size = 0x4, scoped, tag = 'scratch operand']
  #allocation6 [shape = 's32[]', space=sflag, size = 0x4, offset = 0, fixed_abs, tag = 'sflag constant byte address 0x0 - dummy sync flag']
  %s0 = inlined_call_operand.vmem [shape: f32[2,18,18,128], index: 0, kind: input, shape index: {}]
  %s1 = inlined_call_operand.vmem [shape: f32[3,3,128], index: 1, kind: input, shape index: {}]
  %s2 = inlined_call_operand.vmem [shape: f32[128,128], index: 2, kind: input, shape index: {}]
  %s3 = inlined_call_operand.vmem [shape: f32[1,128], index: 3, kind: input, shape index: {}]
  %s4 = inlined_call_operand.hbm [shape: f32[2,16,16,128], index: 4, kind: output, shape index: {}]
  %s5 = sld [smem:[#allocation0]]
  $region82: #{tpu_custom_call.1} parent=0
    _
  %s7 = ssub.s32 1, %s5
  %s8 = scalar_select 0, %s7, %s5
  $region1: #{tpu_custom_call.1} parent=0
    #allocation4 [shape = 'u8[131072]{0}', space=vmem, size = 0x20000, scoped, tag = 'output window, operand 0']
    #allocation5 [shape = 's32[2]{0}', space=sflag, size = 0x8, scoped, tag = 'scoped memory for tpu_custom_call.1']
    %9 = vsyncpa [#allocation5], 0
    %s10 = scalar_lea.sflag [#allocation5], 1
    %11 = vsyncpa %s10, 0
    loop: start=0, step=1, limit=6
    $region2: #{tpu_custom_call.1} parent=1 // loop_pre_header
      _
    $region3: #{tpu_custom_call.1} parent=1 // loop_header
      %s13 = sphi 0, %s17
      %p14 = scmp.ge.s32.totalorder %s13, 6
      %s20 = sphi 0, %s32
      %s21 = sphi 0, %s28
      %s22 = sphi 0, %s20
      %s23 = sphi 0, %s21
      %s24 = sphi 0, %s22
      %s25 = sphi 0, %s23
      %s33 = sphi 0, %s33
      %s35 = sphi 0, %s33
      %s36 = sphi 0, %s35
      %s50 = sphi 0, %s36
      %s54 = sphi 0, %s54
      %s56 = sphi 0, %s54
      %s57 = sphi 0, %s56
      %s71 = sphi 0, %s57
      %s75 = sphi 0, %s75
      %s77 = sphi 0, %s75
      %s78 = sphi 0, %s77
      %s92 = sphi 0, %s78
      %s100 = sphi 0, %s102
      %s103 = sphi 0, %s100
      %s104 = sphi 0, %s103
      %s120 = sphi 0, %s104
    $region4: #{tpu_custom_call.1} parent=1 // loop_header_branch
      %16 = sbr.rel (%p14) target = $region8
    $region5: #{tpu_custom_call.1} parent=1 // loop_body
      %s18 = ssub.s32 %s13, 1
      %s19 = ssub.s32 %s13, 2
      %s26 = sadd.s32 1, %s21
      %p27 = scmp.ge.s32.totalorder %s26, 2
      %s28 = scalar_select %p27, 0, %s26
      %s29 = sadd.s32 1, %s20
      %s30 = scalar_select %p27, %s29, %s20
      %p31 = scmp.ge.s32.totalorder %s30, 2
      %s32 = scalar_select %p31, 0, %s30
      %s34 = sadd.s32 %s33, 1
      %p37 = scmp.eq.s32.totalorder %s13, 3
      %p38 = scmp.ne.s32.totalorder %s33, %s35
      %p39 = scmp.eq.s32.totalorder %s13, 0
      %p40 = por %p38, %p39
      %p41 = scmp.ne.s32.totalorder %s33, %s35
      %p42 = scmp.eq.s32.totalorder %s18, 3
      %p43 = por %p41, %p42
      %p44 = scmp.ne.s32.totalorder %s35, %s36
      %p45 = scmp.eq.s32.totalorder %s18, 0
      %p46 = por %p44, %p45
      %p47 = scmp.ne.s32.totalorder %s35, %s36
      %p48 = scmp.eq.s32.totalorder %s19, 3
      %p49 = por %p47, %p48
      %p51 = scmp.ne.s32.totalorder %s36, %s50
      %p52 = scmp.eq.s32.totalorder %s19, 0
      %p53 = por %p51, %p52
      %s55 = sadd.s32 %s54, 1
      %p58 = scmp.eq.s32.totalorder %s13, 3
      %p59 = scmp.ne.s32.totalorder %s54, %s56
      %p60 = scmp.eq.s32.totalorder %s13, 0
      %p61 = por %p59, %p60
      %p62 = scmp.ne.s32.totalorder %s54, %s56
      %p63 = scmp.eq.s32.totalorder %s18, 3
      %p64 = por %p62, %p63
      %p65 = scmp.ne.s32.totalorder %s56, %s57
      %p66 = scmp.eq.s32.totalorder %s18, 0
      %p67 = por %p65, %p66
      %p68 = scmp.ne.s32.totalorder %s56, %s57
      %p69 = scmp.eq.s32.totalorder %s19, 3
      %p70 = por %p68, %p69
      %p72 = scmp.ne.s32.totalorder %s57, %s71
      %p73 = scmp.eq.s32.totalorder %s19, 0
      %p74 = por %p72, %p73
      %s76 = sadd.s32 %s75, 1
      %p79 = scmp.eq.s32.totalorder %s13, 3
      %p80 = scmp.ne.s32.totalorder %s75, %s77
      %p81 = scmp.eq.s32.totalorder %s13, 0
      %p82 = por %p80, %p81
      %p83 = scmp.ne.s32.totalorder %s75, %s77
      %p84 = scmp.eq.s32.totalorder %s18, 3
      %p85 = por %p83, %p84
      %p86 = scmp.ne.s32.totalorder %s77, %s78
      %p87 = scmp.eq.s32.totalorder %s18, 0
      %p88 = por %p86, %p87
      %p89 = scmp.ne.s32.totalorder %s77, %s78
      %p90 = scmp.eq.s32.totalorder %s19, 3
      %p91 = por %p89, %p90
      %p93 = scmp.ne.s32.totalorder %s78, %s92
      %p94 = scmp.eq.s32.totalorder %s19, 0
      %p95 = por %p93, %p94
      %s96 = ssub.s32 %s20, %s32
      %s97 = ssub.s32 %s21, %s28
      %s98 = sor.u32 %s96, %s97
      %p99 = scmp.eq.s32.totalorder %s98, 0
      %s101 = sadd.s32 %s100, 1
      %s102 = scalar_select %p99, %s100, %s101
      %p105 = pneg %p99
      %p106 = scmp.eq.s32.totalorder %s13, 3
      %p107 = por %p105, %p106
      %p108 = scmp.ne.s32.totalorder %s100, %s103
      %p109 = scmp.eq.s32.totalorder %s13, 0
      %p110 = por %p108, %p109
      %p111 = scmp.ne.s32.totalorder %s100, %s103
      %p112 = scmp.eq.s32.totalorder %s18, 3
      %p113 = por %p111, %p112
      %p114 = scmp.ne.s32.totalorder %s103, %s104
      %p115 = scmp.eq.s32.totalorder %s18, 0
      %p116 = por %p114, %p115
      %p117 = scmp.ne.s32.totalorder %s103, %s104
      %p118 = scmp.eq.s32.totalorder %s19, 3
      %p119 = por %p117, %p118
      %p121 = scmp.ne.s32.totalorder %s104, %s120
      %p122 = scmp.eq.s32.totalorder %s19, 0
      %p123 = por %p121, %p122
      %p124 = scmp.le.s32.totalorder 1, %s13
      %p125 = scmp.lt.s32.totalorder %s13, 5
      %p126 = pnand %p124, %p125
      %p127 = pneg %p126
      // Predicated region
      $region9: #{tpu_custom_call.1} parent=5 // pred_check
        _
      $region10: #{tpu_custom_call.1} parent=5 // pred_check_branch
        %129 = sbr.rel (%p126) target = $region12
      $region11: #{tpu_custom_call.1} parent=5 // pred_region
        %s130 = ssub.s32 %s13, 1
        // Predicated region
        $region13: #{tpu_custom_call.1} parent=11 // pred_check
          %p131 = pneg %p46
        $region14: #{tpu_custom_call.1} parent=11 // pred_check_branch
          %133 = sbr.rel (%p131) target = $region16
        $region15: #{tpu_custom_call.1} parent=11 // pred_region
          _
        $region16: #{tpu_custom_call.1} parent=11 // pred_fallthru
          _
        // Predicated region
        $region17: #{tpu_custom_call.1} parent=11 // pred_check
          %p134 = pneg %p67
        $region18: #{tpu_custom_call.1} parent=11 // pred_check_branch
          %136 = sbr.rel (%p134) target = $region20
        $region19: #{tpu_custom_call.1} parent=11 // pred_region
          _
        $region20: #{tpu_custom_call.1} parent=11 // pred_fallthru
          _
        // Predicated region
        $region21: #{tpu_custom_call.1} parent=11 // pred_check
          %p137 = pneg %p88
        $region22: #{tpu_custom_call.1} parent=11 // pred_check_branch
          %139 = sbr.rel (%p137) target = $region24
        $region23: #{tpu_custom_call.1} parent=11 // pred_region
          _
        $region24: #{tpu_custom_call.1} parent=11 // pred_fallthru
          _
      $region12: #{tpu_custom_call.1} parent=5 // pred_fallthru
        _
      %p140 = scmp.lt.s32.totalorder %s13, 4
      // Predicated region
      $region25: #{tpu_custom_call.1} parent=5 // pred_check
        %p141 = pneg %p140
      $region26: #{tpu_custom_call.1} parent=5 // pred_check_branch
        %143 = sbr.rel (%p141) target = $region28
      $region27: #{tpu_custom_call.1} parent=5 // pred_region
        _
      $region28: #{tpu_custom_call.1} parent=5 // pred_fallthru
        _
      %p144 = scmp.le.s32.totalorder 1, %s13
      %p145 = scmp.lt.s32.totalorder %s13, 5
      %p146 = pnand %p144, %p145
      %p147 = pneg %p146
      // Predicated region
      $region29: #{tpu_custom_call.1} parent=5 // pred_check
        _
      $region30: #{tpu_custom_call.1} parent=5 // pred_check_branch
        %149 = sbr.rel (%p146) target = $region32
      $region31: #{tpu_custom_call.1} parent=5 // pred_region
        %s150 = ssub.s32 %s13, 1
        %p151 = pneg %p46
        %p152 = pneg %p43
        %p153 = pneg %p67
        %p154 = pneg %p64
        %p155 = pneg %p88
        %p156 = pneg %p85
        %p157 = pneg %p116
        %p158 = pneg %p113
        %s159 = sand.u32 %s103, 1
        %s160 = scalar_lea.sflag [#allocation5], %s159
        %s161 = sand.u32 %s103, 1
        %s162 = smul.addr %s161, 128
        %s163 = scalar_lea.vmem [#allocation4], %s162
        %s164 = smul.u32 8, %s23
        %s165 = smul.u32 %s23, 8
        %s166 = smul.u32 %s165, 24
        %s167 = smul.u32 %s22, 432
        %s168 = sadd.s32 %s166, %s167
        %s169 = scalar_lea.vmem %s0, %s168
        %p171 = scmp.lt.u32.totalorder 18, 8
        %p172 = pneg %p171
        // Predicated region
        $region33: #{tpu_custom_call.1} parent=31 // pred_check
          _
        $region34: #{tpu_custom_call.1} parent=31 // pred_check_branch
          %174 = sbr.rel (%p171) target = $region36
        $region35: #{tpu_custom_call.1} parent=31 // pred_region
          %s207 = sand.u32 18, 7
          %p208 = scmp.eq.s32.totalorder %s207, 0
          %p209 = pneg %p208
          // Predicated region
          $region48: #{tpu_custom_call.1} parent=35 // pred_check
            _
          $region49: #{tpu_custom_call.1} parent=35 // pred_check_branch
            %211 = sbr.rel (%p208) target = $region51
          $region50: #{tpu_custom_call.1} parent=35 // pred_region
            %s212 = sand.u32 18, 7
            %s213 = ssub.s32 18, %s212
            %s214 = scalar_lea.vmem %s169, %s213
            %s215 = ssub.s32 18, %s212
            %s216 = scalar_lea.vmem [#allocation2], %s215
            loop: start=0, step=1, limit=1
            $region52: #{tpu_custom_call.1} parent=50 // loop_pre_header
              _
            $region53: #{tpu_custom_call.1} parent=50 // loop_header
              %s218 = sphi 0, %s222
              %p219 = scmp.ge.s32.totalorder %s218, 1
              %s223 = sphi %s169, %s169
              %s224 = sphi [#allocation2], [#allocation2]
            $region54: #{tpu_custom_call.1} parent=50 // loop_header_branch
              %221 = sbr.rel (%p219) target = $region58
            $region55: #{tpu_custom_call.1} parent=50 // loop_body
              %v225 = vld [vmem:[%s223] sm:$0xff]
              %226 = vst [vmem:[%s224] sm:$0xff] %v225
              %v227 = vld [vmem:[%s223 + $0x8] sm:$0xff]
              %228 = vst [vmem:[%s224 + $0x8] sm:$0xff] %v227
              %v229 = vld [vmem:[%s223 + $0x18] sm:$0xff]
              %230 = vst [vmem:[%s224 + $0x18] sm:$0xff] %v229
              %v231 = vld [vmem:[%s223 + $0x20] sm:$0xff]
              %232 = vst [vmem:[%s224 + $0x20] sm:$0xff] %v231
              %v233 = vld [vmem:[%s223 + $0x30] sm:$0xff]
              %234 = vst [vmem:[%s224 + $0x30] sm:$0xff] %v233
              %v235 = vld [vmem:[%s223 + $0x38] sm:$0xff]
              %236 = vst [vmem:[%s224 + $0x38] sm:$0xff] %v235
              %v237 = vld [vmem:[%s223 + $0x48] sm:$0xff]
              %238 = vst [vmem:[%s224 + $0x48] sm:$0xff] %v237
              %v239 = vld [vmem:[%s223 + $0x50] sm:$0xff]
              %240 = vst [vmem:[%s224 + $0x50] sm:$0xff] %v239
              %v241 = vld [vmem:[%s223 + $0x60] sm:$0xff]
              %242 = vst [vmem:[%s224 + $0x60] sm:$0xff] %v241
              %v243 = vld [vmem:[%s223 + $0x68] sm:$0xff]
              %244 = vst [vmem:[%s224 + $0x68] sm:$0xff] %v243
              %v245 = vld [vmem:[%s223 + $0x78] sm:$0xff]
              %246 = vst [vmem:[%s224 + $0x78] sm:$0xff] %v245
              %v247 = vld [vmem:[%s223 + $0x80] sm:$0xff]
              %248 = vst [vmem:[%s224 + $0x80] sm:$0xff] %v247
              %v249 = vld [vmem:[%s223 + $0x90] sm:$0xff]
              %250 = vst [vmem:[%s224 + $0x90] sm:$0xff] %v249
              %v251 = vld [vmem:[%s223 + $0x98] sm:$0xff]
              %252 = vst [vmem:[%s224 + $0x98] sm:$0xff] %v251
              %v253 = vld [vmem:[%s223 + $0xa8] sm:$0xff]
              %254 = vst [vmem:[%s224 + $0xa8] sm:$0xff] %v253
              %v255 = vld [vmem:[%s223 + $0xb0] sm:$0xff]
              %256 = vst [vmem:[%s224 + $0xb0] sm:$0xff] %v255
              %v257 = vld [vmem:[%s223 + $0xc0] sm:$0xff]
              %258 = vst [vmem:[%s224 + $0xc0] sm:$0xff] %v257
              %v259 = vld [vmem:[%s223 + $0xc8] sm:$0xff]
              %260 = vst [vmem:[%s224 + $0xc8] sm:$0xff] %v259
              %v261 = vld [vmem:[%s223 + $0xd8] sm:$0xff]
              %262 = vst [vmem:[%s224 + $0xd8] sm:$0xff] %v261
              %v263 = vld [vmem:[%s223 + $0xe0] sm:$0xff]
              %264 = vst [vmem:[%s224 + $0xe0] sm:$0xff] %v263
            $region56: #{tpu_custom_call.1} parent=50 // loop_footer
              %s222 = sadd.s32 1, %s218
            $region57: #{tpu_custom_call.1} parent=50 // loop_footer_branch
              %217 = sbr.rel target = $region53
            $region58: #{tpu_custom_call.1} parent=50 // loop_exit
              _
            %s265 = sshllo.u32 0, %s212
            loop: start=0, step=1, limit=1
            $region59: #{tpu_custom_call.1} parent=50 // loop_pre_header
              _
            $region60: #{tpu_custom_call.1} parent=50 // loop_header
              %s267 = sphi 0, %s271
              %p268 = scmp.ge.s32.totalorder %s267, 1
              %s272 = sphi %s214, %s214
              %s273 = sphi %s216, %s216
            $region61: #{tpu_custom_call.1} parent=50 // loop_header_branch
              %270 = sbr.rel (%p268) target = $region65
            $region62: #{tpu_custom_call.1} parent=50 // loop_body
              %v274 = vld [vmem:[%s272] sm:%s265]
              %275 = vst [vmem:[%s273] sm:%s265] %v274
              %v276 = vld [vmem:[%s272 + $0x18] sm:%s265]
              %277 = vst [vmem:[%s273 + $0x18] sm:%s265] %v276
              %v278 = vld [vmem:[%s272 + $0x30] sm:%s265]
              %279 = vst [vmem:[%s273 + $0x30] sm:%s265] %v278
              %v280 = vld [vmem:[%s272 + $0x48] sm:%s265]
              %281 = vst [vmem:[%s273 + $0x48] sm:%s265] %v280
              %v282 = vld [vmem:[%s272 + $0x60] sm:%s265]
              %283 = vst [vmem:[%s273 + $0x60] sm:%s265] %v282
              %v284 = vld [vmem:[%s272 + $0x78] sm:%s265]
              %285 = vst [vmem:[%s273 + $0x78] sm:%s265] %v284
              %v286 = vld [vmem:[%s272 + $0x90] sm:%s265]
              %287 = vst [vmem:[%s273 + $0x90] sm:%s265] %v286
              %v288 = vld [vmem:[%s272 + $0xa8] sm:%s265]
              %289 = vst [vmem:[%s273 + $0xa8] sm:%s265] %v288
              %v290 = vld [vmem:[%s272 + $0xc0] sm:%s265]
              %291 = vst [vmem:[%s273 + $0xc0] sm:%s265] %v290
              %v292 = vld [vmem:[%s272 + $0xd8] sm:%s265]
              %293 = vst [vmem:[%s273 + $0xd8] sm:%s265] %v292
            $region63: #{tpu_custom_call.1} parent=50 // loop_footer
              %s271 = sadd.s32 1, %s267
            $region64: #{tpu_custom_call.1} parent=50 // loop_footer_branch
              %266 = sbr.rel target = $region60
            $region65: #{tpu_custom_call.1} parent=50 // loop_exit
              _
          $region51: #{tpu_custom_call.1} parent=35 // pred_fallthru
            _
        $region36: #{tpu_custom_call.1} parent=31 // pred_fallthru
          _
        // Predicated region
        $region37: #{tpu_custom_call.1} parent=31 // pred_check
          %p175 = pneg %p171
        $region38: #{tpu_custom_call.1} parent=31 // pred_check_branch
          %177 = sbr.rel (%p175) target = $region40
        $region39: #{tpu_custom_call.1} parent=31 // pred_region
          %s178 = sshllo.u32 0, 18
          loop: start=0, step=1, limit=1
          $region41: #{tpu_custom_call.1} parent=39 // loop_pre_header
            _
          $region42: #{tpu_custom_call.1} parent=39 // loop_header
            %s180 = sphi 0, %s184
            %p181 = scmp.ge.s32.totalorder %s180, 1
            %s185 = sphi %s169, %s169
            %s186 = sphi [#allocation2], [#allocation2]
          $region43: #{tpu_custom_call.1} parent=39 // loop_header_branch
            %183 = sbr.rel (%p181) target = $region47
          $region44: #{tpu_custom_call.1} parent=39 // loop_body
            %v187 = vld [vmem:[%s185] sm:%s178]
            %188 = vst [vmem:[%s186] sm:%s178] %v187
            %v189 = vld [vmem:[%s185 + $0x18] sm:%s178]
            %190 = vst [vmem:[%s186 + $0x18] sm:%s178] %v189
            %v191 = vld [vmem:[%s185 + $0x30] sm:%s178]
            %192 = vst [vmem:[%s186 + $0x30] sm:%s178] %v191
            %v193 = vld [vmem:[%s185 + $0x48] sm:%s178]
            %194 = vst [vmem:[%s186 + $0x48] sm:%s178] %v193
            %v195 = vld [vmem:[%s185 + $0x60] sm:%s178]
            %196 = vst [vmem:[%s186 + $0x60] sm:%s178] %v195
            %v197 = vld [vmem:[%s185 + $0x78] sm:%s178]
            %198 = vst [vmem:[%s186 + $0x78] sm:%s178] %v197
            %v199 = vld [vmem:[%s185 + $0x90] sm:%s178]
            %200 = vst [vmem:[%s186 + $0x90] sm:%s178] %v199
            %v201 = vld [vmem:[%s185 + $0xa8] sm:%s178]
            %202 = vst [vmem:[%s186 + $0xa8] sm:%s178] %v201
            %v203 = vld [vmem:[%s185 + $0xc0] sm:%s178]
            %204 = vst [vmem:[%s186 + $0xc0] sm:%s178] %v203
            %v205 = vld [vmem:[%s185 + $0xd8] sm:%s178]
            %206 = vst [vmem:[%s186 + $0xd8] sm:%s178] %v205
          $region45: #{tpu_custom_call.1} parent=39 // loop_footer
            %s184 = sadd.s32 1, %s180
          $region46: #{tpu_custom_call.1} parent=39 // loop_footer_branch
            %179 = sbr.rel target = $region42
          $region47: #{tpu_custom_call.1} parent=39 // loop_exit
            _
        $region40: #{tpu_custom_call.1} parent=31 // pred_fallthru
          _
        // Predicated region
        $region66: #{tpu_custom_call.1} parent=31 // pred_check
          _
        $region67: #{tpu_custom_call.1} parent=31 // pred_check_branch
          %296 = sbr.rel (0) target = $region69
        $region68: #{tpu_custom_call.1} parent=31 // pred_region
          %297 = vsyncadd [#allocation3], 2880
        $region69: #{tpu_custom_call.1} parent=31 // pred_fallthru
          _
        %s298 = smul.u32 1, 10
        %s299 = smul.u32 %s298, 18
        %s300 = smul.u32 %s299, 1
        %s301 = sshll.u32 %s300, 4
        %302 = dma.done [#allocation3], %s301
        %v303 = vld [vmem:[#allocation2] sm:$0xff]
        %v304 = vld [vmem:[#allocation2 + $0x8] sm:$0xff]
        %v305 = vld [vmem:[#allocation2 + $0x10] sm:$0x3]
        %v306 = vld [vmem:[#allocation2 + $0x18] sm:$0xff]
        %v307 = vld [vmem:[#allocation2 + $0x20] sm:$0xff]
        %v308 = vld [vmem:[#allocation2 + $0x28] sm:$0x3]
        %v309 = vld [vmem:[#allocation2 + $0x30] sm:$0xff]
        %v310 = vld [vmem:[#allocation2 + $0x38] sm:$0xff]
        %v311 = vld [vmem:[#allocation2 + $0x40] sm:$0x3]
        %v312 = vld [vmem:[#allocation2 + $0x48] sm:$0xff]
        %v313 = vld [vmem:[#allocation2 + $0x50] sm:$0xff]
        %v314 = vld [vmem:[#allocation2 + $0x58] sm:$0x3]
        %v315 = vld [vmem:[#allocation2 + $0x60] sm:$0xff]
        %v316 = vld [vmem:[#allocation2 + $0x68] sm:$0xff]
        %v317 = vld [vmem:[#allocation2 + $0x70] sm:$0x3]
        %v318 = vld [vmem:[#allocation2 + $0x78] sm:$0xff]
        %v319 = vld [vmem:[#allocation2 + $0x80] sm:$0xff]
        %v320 = vld [vmem:[#allocation2 + $0x88] sm:$0x3]
        %v321 = vld [vmem:[#allocation2 + $0x90] sm:$0xff]
        %v322 = vld [vmem:[#allocation2 + $0x98] sm:$0xff]
        %v323 = vld [vmem:[#allocation2 + $0xa0] sm:$0x3]
        %v324 = vld [vmem:[#allocation2 + $0xa8] sm:$0xff]
        %v325 = vld [vmem:[#allocation2 + $0xb0] sm:$0xff]
        %v326 = vld [vmem:[#allocation2 + $0xb8] sm:$0x3]
        %v327 = vld [vmem:[#allocation2 + $0xc0] sm:$0xff]
        %v328 = vld [vmem:[#allocation2 + $0xc8] sm:$0xff]
        %v329 = vld [vmem:[#allocation2 + $0xd0] sm:$0x3]
        %v330 = vld [vmem:[#allocation2 + $0xd8] sm:$0xff]
        %v331 = vld [vmem:[#allocation2 + $0xe0] sm:$0xff]
        %v332 = vld [vmem:[#allocation2 + $0xe8] sm:$0x3]
        %v333 = vld [vmem:[%s1] sm:$0x7]
        %v334 = vld [vmem:[%s1 + $0x4] sm:$0x7]
        %v335 = vld [vmem:[%s1 + $0x8] sm:$0x7]
        %v336 = vlaneseq
        %v337 = vshrl.u32 %v336, 7
        %v338 = vsub.s32 0, %v337
        %v339 = vrot.slane %v333, %v338
        %v340 = vmul.f32 %v303, %v339
        %v341 = vmul.f32 %v304, %v339
        %v342 = vmul.f32 %v306, %v339
        %v343 = vmul.f32 %v307, %v339
        %v344 = vmul.f32 %v309, %v339
        %v345 = vmul.f32 %v310, %v339
        %v346 = vmul.f32 %v312, %v339
        %v347 = vmul.f32 %v313, %v339
        %v348 = vmul.f32 %v315, %v339
        %v349 = vmul.f32 %v316, %v339
        %v350 = vmul.f32 %v318, %v339
        %v351 = vmul.f32 %v319, %v339
        %v352 = vmul.f32 %v321, %v339
        %v353 = vmul.f32 %v322, %v339
        %v354 = vmul.f32 %v324, %v339
        %v355 = vmul.f32 %v325, %v339
        %v356 = vadd.f32 %v340, 0.0
        %v357 = vadd.f32 %v341, 0.0
        %v358 = vadd.f32 %v342, 0.0
        %v359 = vadd.f32 %v343, 0.0
        %v360 = vadd.f32 %v344, 0.0
        %v361 = vadd.f32 %v345, 0.0
        %v362 = vadd.f32 %v346, 0.0
        %v363 = vadd.f32 %v347, 0.0
        %v364 = vadd.f32 %v348, 0.0
        %v365 = vadd.f32 %v349, 0.0
        %v366 = vadd.f32 %v350, 0.0
        %v367 = vadd.f32 %v351, 0.0
        %v368 = vadd.f32 %v352, 0.0
        %v369 = vadd.f32 %v353, 0.0
        %v370 = vadd.f32 %v354, 0.0
        %v371 = vadd.f32 %v355, 0.0
        %v372 = vlaneseq
        %v373 = vshrl.u32 %v372, 7
        %v374 = vsub.s32 0, %v373
        %v375 = vrot.slane %v334, %v374
        %v376 = vmul.f32 %v306, %v375
        %v377 = vmul.f32 %v307, %v375
        %v378 = vmul.f32 %v309, %v375
        %v379 = vmul.f32 %v310, %v375
        %v380 = vmul.f32 %v312, %v375
        %v381 = vmul.f32 %v313, %v375
        %v382 = vmul.f32 %v315, %v375
        %v383 = vmul.f32 %v316, %v375
        %v384 = vmul.f32 %v318, %v375
        %v385 = vmul.f32 %v319, %v375
        %v386 = vmul.f32 %v321, %v375
        %v387 = vmul.f32 %v322, %v375
        %v388 = vmul.f32 %v324, %v375
        %v389 = vmul.f32 %v325, %v375
        %v390 = vmul.f32 %v327, %v375
        %v391 = vmul.f32 %v328, %v375
        %v392 = vadd.f32 %v356, %v376
        %v393 = vadd.f32 %v357, %v377
        %v394 = vadd.f32 %v358, %v378
        %v395 = vadd.f32 %v359, %v379
        %v396 = vadd.f32 %v360, %v380
        %v397 = vadd.f32 %v361, %v381
        %v398 = vadd.f32 %v362, %v382
        %v399 = vadd.f32 %v363, %v383
        %v400 = vadd.f32 %v364, %v384
        %v401 = vadd.f32 %v365, %v385
        %v402 = vadd.f32 %v366, %v386
        %v403 = vadd.f32 %v367, %v387
        %v404 = vadd.f32 %v368, %v388
        %v405 = vadd.f32 %v369, %v389
        %v406 = vadd.f32 %v370, %v390
        %v407 = vadd.f32 %v371, %v391
        %v408 = vlaneseq
        %v409 = vshrl.u32 %v408, 7
        %v410 = vsub.s32 0, %v409
        %v411 = vrot.slane %v335, %v410
        %v412 = vmul.f32 %v309, %v411
        %v413 = vmul.f32 %v310, %v411
        %v414 = vmul.f32 %v312, %v411
        %v415 = vmul.f32 %v313, %v411
        %v416 = vmul.f32 %v315, %v411
        %v417 = vmul.f32 %v316, %v411
        %v418 = vmul.f32 %v318, %v411
        %v419 = vmul.f32 %v319, %v411
        %v420 = vmul.f32 %v321, %v411
        %v421 = vmul.f32 %v322, %v411
        %v422 = vmul.f32 %v324, %v411
        %v423 = vmul.f32 %v325, %v411
        %v424 = vmul.f32 %v327, %v411
        %v425 = vmul.f32 %v328, %v411
        %v426 = vmul.f32 %v330, %v411
        %v427 = vmul.f32 %v331, %v411
        %v428 = vadd.f32 %v392, %v412
        %v429 = vadd.f32 %v393, %v413
        %v430 = vadd.f32 %v394, %v414
        %v431 = vadd.f32 %v395, %v415
        %v432 = vadd.f32 %v396, %v416
        %v433 = vadd.f32 %v397, %v417
        %v434 = vadd.f32 %v398, %v418
        %v435 = vadd.f32 %v399, %v419
        %v436 = vadd.f32 %v400, %v420
        %v437 = vadd.f32 %v401, %v421
        %v438 = vadd.f32 %v402, %v422
        %v439 = vadd.f32 %v403, %v423
        %v440 = vadd.f32 %v404, %v424
        %v441 = vadd.f32 %v405, %v425
        %v442 = vadd.f32 %v406, %v426
        %v443 = vadd.f32 %v407, %v427
        %v444 = vlaneseq
        %v445 = vshrl.u32 %v444, 7
        %v446 = vsub.s32 1, %v445
        %v447 = vrot.slane %v333, %v446
        %v448 = vmul.f32 %v303, %v447
        %v449 = vmul.f32 %v304, %v447
        %v450 = vmul.f32 %v305, %v447
        %v451 = vmul.f32 %v306, %v447
        %v452 = vmul.f32 %v307, %v447
        %v453 = vmul.f32 %v308, %v447
        %v454 = vmul.f32 %v309, %v447
        %v455 = vmul.f32 %v310, %v447
        %v456 = vmul.f32 %v311, %v447
        %v457 = vmul.f32 %v312, %v447
        %v458 = vmul.f32 %v313, %v447
        %v459 = vmul.f32 %v314, %v447
        %v460 = vmul.f32 %v315, %v447
        %v461 = vmul.f32 %v316, %v447
        %v462 = vmul.f32 %v317, %v447
        %v463 = vmul.f32 %v318, %v447
        %v464 = vmul.f32 %v319, %v447
        %v465 = vmul.f32 %v320, %v447
        %v466 = vmul.f32 %v321, %v447
        %v467 = vmul.f32 %v322, %v447
        %v468 = vmul.f32 %v323, %v447
        %v469 = vmul.f32 %v324, %v447
        %v470 = vmul.f32 %v325, %v447
        %v471 = vmul.f32 %v326, %v447
        %vm496 = vcmask 1046528
        %v497 = vrot.slane %v448, 1
        %v498 = vrot.slane %v449, 1
        %v499 = vsel %vm496, %v497, %v498
        %v500 = vrot.slane %v450, 1
        %v501 = vsel %vm496, %v498, %v500
        %v502 = vrot.slane %v451, 1
        %v503 = vrot.slane %v452, 1
        %v504 = vsel %vm496, %v502, %v503
        %v505 = vrot.slane %v453, 1
        %v506 = vsel %vm496, %v503, %v505
        %v507 = vrot.slane %v454, 1
        %v508 = vrot.slane %v455, 1
        %v509 = vsel %vm496, %v507, %v508
        %v510 = vrot.slane %v456, 1
        %v511 = vsel %vm496, %v508, %v510
        %v512 = vrot.slane %v457, 1
        %v513 = vrot.slane %v458, 1
        %v514 = vsel %vm496, %v512, %v513
        %v515 = vrot.slane %v459, 1
        %v516 = vsel %vm496, %v513, %v515
        %v517 = vrot.slane %v460, 1
        %v518 = vrot.slane %v461, 1
        %v519 = vsel %vm496, %v517, %v518
        %v520 = vrot.slane %v462, 1
        %v521 = vsel %vm496, %v518, %v520
        %v522 = vrot.slane %v463, 1
        %v523 = vrot.slane %v464, 1
        %v524 = vsel %vm496, %v522, %v523
        %v525 = vrot.slane %v465, 1
        %v526 = vsel %vm496, %v523, %v525
        %v527 = vrot.slane %v466, 1
        %v528 = vrot.slane %v467, 1
        %v529 = vsel %vm496, %v527, %v528
        %v530 = vrot.slane %v468, 1
        %v531 = vsel %vm496, %v528, %v530
        %v532 = vrot.slane %v469, 1
        %v533 = vrot.slane %v470, 1
        %v534 = vsel %vm496, %v532, %v533
        %v535 = vrot.slane %v471, 1
        %v536 = vsel %vm496, %v533, %v535
        %v553 = vadd.f32 %v428, %v499
        %v554 = vadd.f32 %v429, %v501
        %v555 = vadd.f32 %v430, %v504
        %v556 = vadd.f32 %v431, %v506
        %v557 = vadd.f32 %v432, %v509
        %v558 = vadd.f32 %v433, %v511
        %v559 = vadd.f32 %v434, %v514
        %v560 = vadd.f32 %v435, %v516
        %v561 = vadd.f32 %v436, %v519
        %v562 = vadd.f32 %v437, %v521
        %v563 = vadd.f32 %v438, %v524
        %v564 = vadd.f32 %v439, %v526
        %v565 = vadd.f32 %v440, %v529
        %v566 = vadd.f32 %v441, %v531
        %v567 = vadd.f32 %v442, %v534
        %v568 = vadd.f32 %v443, %v536
        %v569 = vlaneseq
        %v570 = vshrl.u32 %v569, 7
        %v571 = vsub.s32 1, %v570
        %v572 = vrot.slane %v334, %v571
        %v573 = vmul.f32 %v306, %v572
        %v574 = vmul.f32 %v307, %v572
        %v575 = vmul.f32 %v308, %v572
        %v576 = vmul.f32 %v309, %v572
        %v577 = vmul.f32 %v310, %v572
        %v578 = vmul.f32 %v311, %v572
        %v579 = vmul.f32 %v312, %v572
        %v580 = vmul.f32 %v313, %v572
        %v581 = vmul.f32 %v314, %v572
        %v582 = vmul.f32 %v315, %v572
        %v583 = vmul.f32 %v316, %v572
        %v584 = vmul.f32 %v317, %v572
        %v585 = vmul.f32 %v318, %v572
        %v586 = vmul.f32 %v319, %v572
        %v587 = vmul.f32 %v320, %v572
        %v588 = vmul.f32 %v321, %v572
        %v589 = vmul.f32 %v322, %v572
        %v590 = vmul.f32 %v323, %v572
        %v591 = vmul.f32 %v324, %v572
        %v592 = vmul.f32 %v325, %v572
        %v593 = vmul.f32 %v326, %v572
        %v594 = vmul.f32 %v327, %v572
        %v595 = vmul.f32 %v328, %v572
        %v596 = vmul.f32 %v329, %v572
        %v621 = vrot.slane %v573, 1
        %v622 = vrot.slane %v574, 1
        %v623 = vsel %vm496, %v621, %v622
        %v624 = vrot.slane %v575, 1
        %v625 = vsel %vm496, %v622, %v624
        %v626 = vrot.slane %v576, 1
        %v627 = vrot.slane %v577, 1
        %v628 = vsel %vm496, %v626, %v627
        %v629 = vrot.slane %v578, 1
        %v630 = vsel %vm496, %v627, %v629
        %v631 = vrot.slane %v579, 1
        %v632 = vrot.slane %v580, 1
        %v633 = vsel %vm496, %v631, %v632
        %v634 = vrot.slane %v581, 1
        %v635 = vsel %vm496, %v632, %v634
        %v636 = vrot.slane %v582, 1
        %v637 = vrot.slane %v583, 1
        %v638 = vsel %vm496, %v636, %v637
        %v639 = vrot.slane %v584, 1
        %v640 = vsel %vm496, %v637, %v639
        %v641 = vrot.slane %v585, 1
        %v642 = vrot.slane %v586, 1
        %v643 = vsel %vm496, %v641, %v642
        %v644 = vrot.slane %v587, 1
        %v645 = vsel %vm496, %v642, %v644
        %v646 = vrot.slane %v588, 1
        %v647 = vrot.slane %v589, 1
        %v648 = vsel %vm496, %v646, %v647
        %v649 = vrot.slane %v590, 1
        %v650 = vsel %vm496, %v647, %v649
        %v651 = vrot.slane %v591, 1
        %v652 = vrot.slane %v592, 1
        %v653 = vsel %vm496, %v651, %v652
        %v654 = vrot.slane %v593, 1
        %v655 = vsel %vm496, %v652, %v654
        %v656 = vrot.slane %v594, 1
        %v657 = vrot.slane %v595, 1
        %v658 = vsel %vm496, %v656, %v657
        %v659 = vrot.slane %v596, 1
        %v660 = vsel %vm496, %v657, %v659
        %v677 = vadd.f32 %v553, %v623
        %v678 = vadd.f32 %v554, %v625
        %v679 = vadd.f32 %v555, %v628
        %v680 = vadd.f32 %v556, %v630
        %v681 = vadd.f32 %v557, %v633
        %v682 = vadd.f32 %v558, %v635
        %v683 = vadd.f32 %v559, %v638
        %v684 = vadd.f32 %v560, %v640
        %v685 = vadd.f32 %v561, %v643
        %v686 = vadd.f32 %v562, %v645
        %v687 = vadd.f32 %v563, %v648
        %v688 = vadd.f32 %v564, %v650
        %v689 = vadd.f32 %v565, %v653
        %v690 = vadd.f32 %v566, %v655
        %v691 = vadd.f32 %v567, %v658
        %v692 = vadd.f32 %v568, %v660
        %v693 = vlaneseq
        %v694 = vshrl.u32 %v693, 7
        %v695 = vsub.s32 1, %v694
        %v696 = vrot.slane %v335, %v695
        %v697 = vmul.f32 %v309, %v696
        %v698 = vmul.f32 %v310, %v696
        %v699 = vmul.f32 %v311, %v696
        %v700 = vmul.f32 %v312, %v696
        %v701 = vmul.f32 %v313, %v696
        %v702 = vmul.f32 %v314, %v696
        %v703 = vmul.f32 %v315, %v696
        %v704 = vmul.f32 %v316, %v696
        %v705 = vmul.f32 %v317, %v696
        %v706 = vmul.f32 %v318, %v696
        %v707 = vmul.f32 %v319, %v696
        %v708 = vmul.f32 %v320, %v696
        %v709 = vmul.f32 %v321, %v696
        %v710 = vmul.f32 %v322, %v696
        %v711 = vmul.f32 %v323, %v696
        %v712 = vmul.f32 %v324, %v696
        %v713 = vmul.f32 %v325, %v696
        %v714 = vmul.f32 %v326, %v696
        %v715 = vmul.f32 %v327, %v696
        %v716 = vmul.f32 %v328, %v696
        %v717 = vmul.f32 %v329, %v696
        %v718 = vmul.f32 %v330, %v696
        %v719 = vmul.f32 %v331, %v696
        %v720 = vmul.f32 %v332, %v696
        %v745 = vrot.slane %v697, 1
        %v746 = vrot.slane %v698, 1
        %v747 = vsel %vm496, %v745, %v746
        %v748 = vrot.slane %v699, 1
        %v749 = vsel %vm496, %v746, %v748
        %v750 = vrot.slane %v700, 1
        %v751 = vrot.slane %v701, 1
        %v752 = vsel %vm496, %v750, %v751
        %v753 = vrot.slane %v702, 1
        %v754 = vsel %vm496, %v751, %v753
        %v755 = vrot.slane %v703, 1
        %v756 = vrot.slane %v704, 1
        %v757 = vsel %vm496, %v755, %v756
        %v758 = vrot.slane %v705, 1
        %v759 = vsel %vm496, %v756, %v758
        %v760 = vrot.slane %v706, 1
        %v761 = vrot.slane %v707, 1
        %v762 = vsel %vm496, %v760, %v761
        %v763 = vrot.slane %v708, 1
        %v764 = vsel %vm496, %v761, %v763
        %v765 = vrot.slane %v709, 1
        %v766 = vrot.slane %v710, 1
        %v767 = vsel %vm496, %v765, %v766
        %v768 = vrot.slane %v711, 1
        %v769 = vsel %vm496, %v766, %v768
        %v770 = vrot.slane %v712, 1
        %v771 = vrot.slane %v713, 1
        %v772 = vsel %vm496, %v770, %v771
        %v773 = vrot.slane %v714, 1
        %v774 = vsel %vm496, %v771, %v773
        %v775 = vrot.slane %v715, 1
        %v776 = vrot.slane %v716, 1
        %v777 = vsel %vm496, %v775, %v776
        %v778 = vrot.slane %v717, 1
        %v779 = vsel %vm496, %v776, %v778
        %v780 = vrot.slane %v718, 1
        %v781 = vrot.slane %v719, 1
        %v782 = vsel %vm496, %v780, %v781
        %v783 = vrot.slane %v720, 1
        %v784 = vsel %vm496, %v781, %v783
        %v801 = vadd.f32 %v677, %v747
        %v802 = vadd.f32 %v678, %v749
        %v803 = vadd.f32 %v679, %v752
        %v804 = vadd.f32 %v680, %v754
        %v805 = vadd.f32 %v681, %v757
        %v806 = vadd.f32 %v682, %v759
        %v807 = vadd.f32 %v683, %v762
        %v808 = vadd.f32 %v684, %v764
        %v809 = vadd.f32 %v685, %v767
        %v810 = vadd.f32 %v686, %v769
        %v811 = vadd.f32 %v687, %v772
        %v812 = vadd.f32 %v688, %v774
        %v813 = vadd.f32 %v689, %v777
        %v814 = vadd.f32 %v690, %v779
        %v815 = vadd.f32 %v691, %v782
        %v816 = vadd.f32 %v692, %v784
        %v817 = vlaneseq
        %v818 = vshrl.u32 %v817, 7
        %v819 = vsub.s32 2, %v818
        %v820 = vrot.slane %v333, %v819
        %v821 = vmul.f32 %v303, %v820
        %v822 = vmul.f32 %v304, %v820
        %v823 = vmul.f32 %v305, %v820
        %v824 = vmul.f32 %v306, %v820
        %v825 = vmul.f32 %v307, %v820
        %v826 = vmul.f32 %v308, %v820
        %v827 = vmul.f32 %v309, %v820
        %v828 = vmul.f32 %v310, %v820
        %v829 = vmul.f32 %v311, %v820
        %v830 = vmul.f32 %v312, %v820
        %v831 = vmul.f32 %v313, %v820
        %v832 = vmul.f32 %v314, %v820
        %v833 = vmul.f32 %v315, %v820
        %v834 = vmul.f32 %v316, %v820
        %v835 = vmul.f32 %v317, %v820
        %v836 = vmul.f32 %v318, %v820
        %v837 = vmul.f32 %v319, %v820
        %v838 = vmul.f32 %v320, %v820
        %v839 = vmul.f32 %v321, %v820
        %v840 = vmul.f32 %v322, %v820
        %v841 = vmul.f32 %v323, %v820
        %v842 = vmul.f32 %v324, %v820
        %v843 = vmul.f32 %v325, %v820
        %v844 = vmul.f32 %v326, %v820
        %vm869 = vcmask 1045504
        %v870 = vrot.slane %v821, 2
        %v871 = vrot.slane %v822, 2
        %v872 = vsel %vm869, %v870, %v871
        %v873 = vrot.slane %v823, 2
        %v874 = vsel %vm869, %v871, %v873
        %v875 = vrot.slane %v824, 2
        %v876 = vrot.slane %v825, 2
        %v877 = vsel %vm869, %v875, %v876
        %v878 = vrot.slane %v826, 2
        %v879 = vsel %vm869, %v876, %v878
        %v880 = vrot.slane %v827, 2
        %v881 = vrot.slane %v828, 2
        %v882 = vsel %vm869, %v880, %v881
        %v883 = vrot.slane %v829, 2
        %v884 = vsel %vm869, %v881, %v883
        %v885 = vrot.slane %v830, 2
        %v886 = vrot.slane %v831, 2
        %v887 = vsel %vm869, %v885, %v886
        %v888 = vrot.slane %v832, 2
        %v889 = vsel %vm869, %v886, %v888
        %v890 = vrot.slane %v833, 2
        %v891 = vrot.slane %v834, 2
        %v892 = vsel %vm869, %v890, %v891
        %v893 = vrot.slane %v835, 2
        %v894 = vsel %vm869, %v891, %v893
        %v895 = vrot.slane %v836, 2
        %v896 = vrot.slane %v837, 2
        %v897 = vsel %vm869, %v895, %v896
        %v898 = vrot.slane %v838, 2
        %v899 = vsel %vm869, %v896, %v898
        %v900 = vrot.slane %v839, 2
        %v901 = vrot.slane %v840, 2
        %v902 = vsel %vm869, %v900, %v901
        %v903 = vrot.slane %v841, 2
        %v904 = vsel %vm869, %v901, %v903
        %v905 = vrot.slane %v842, 2
        %v906 = vrot.slane %v843, 2
        %v907 = vsel %vm869, %v905, %v906
        %v908 = vrot.slane %v844, 2
        %v909 = vsel %vm869, %v906, %v908
        %v926 = vadd.f32 %v801, %v872
        %v927 = vadd.f32 %v802, %v874
        %v928 = vadd.f32 %v803, %v877
        %v929 = vadd.f32 %v804, %v879
        %v930 = vadd.f32 %v805, %v882
        %v931 = vadd.f32 %v806, %v884
        %v932 = vadd.f32 %v807, %v887
        %v933 = vadd.f32 %v808, %v889
        %v934 = vadd.f32 %v809, %v892
        %v935 = vadd.f32 %v810, %v894
        %v936 = vadd.f32 %v811, %v897
        %v937 = vadd.f32 %v812, %v899
        %v938 = vadd.f32 %v813, %v902
        %v939 = vadd.f32 %v814, %v904
        %v940 = vadd.f32 %v815, %v907
        %v941 = vadd.f32 %v816, %v909
        %v942 = vlaneseq
        %v943 = vshrl.u32 %v942, 7
        %v944 = vsub.s32 2, %v943
        %v945 = vrot.slane %v334, %v944
        %v946 = vmul.f32 %v306, %v945
        %v947 = vmul.f32 %v307, %v945
        %v948 = vmul.f32 %v308, %v945
        %v949 = vmul.f32 %v309, %v945
        %v950 = vmul.f32 %v310, %v945
        %v951 = vmul.f32 %v311, %v945
        %v952 = vmul.f32 %v312, %v945
        %v953 = vmul.f32 %v313, %v945
        %v954 = vmul.f32 %v314, %v945
        %v955 = vmul.f32 %v315, %v945
        %v956 = vmul.f32 %v316, %v945
        %v957 = vmul.f32 %v317, %v945
        %v958 = vmul.f32 %v318, %v945
        %v959 = vmul.f32 %v319, %v945
        %v960 = vmul.f32 %v320, %v945
        %v961 = vmul.f32 %v321, %v945
        %v962 = vmul.f32 %v322, %v945
        %v963 = vmul.f32 %v323, %v945
        %v964 = vmul.f32 %v324, %v945
        %v965 = vmul.f32 %v325, %v945
        %v966 = vmul.f32 %v326, %v945
        %v967 = vmul.f32 %v327, %v945
        %v968 = vmul.f32 %v328, %v945
        %v969 = vmul.f32 %v329, %v945
        %v994 = vrot.slane %v946, 2
        %v995 = vrot.slane %v947, 2
        %v996 = vsel %vm869, %v994, %v995
        %v997 = vrot.slane %v948, 2
        %v998 = vsel %vm869, %v995, %v997
        %v999 = vrot.slane %v949, 2
        %v1000 = vrot.slane %v950, 2
        %v1001 = vsel %vm869, %v999, %v1000
        %v1002 = vrot.slane %v951, 2
        %v1003 = vsel %vm869, %v1000, %v1002
        %v1004 = vrot.slane %v952, 2
        %v1005 = vrot.slane %v953, 2
        %v1006 = vsel %vm869, %v1004, %v1005
        %v1007 = vrot.slane %v954, 2
        %v1008 = vsel %vm869, %v1005, %v1007
        %v1009 = vrot.slane %v955, 2
        %v1010 = vrot.slane %v956, 2
        %v1011 = vsel %vm869, %v1009, %v1010
        %v1012 = vrot.slane %v957, 2
        %v1013 = vsel %vm869, %v1010, %v1012
        %v1014 = vrot.slane %v958, 2
        %v1015 = vrot.slane %v959, 2
        %v1016 = vsel %vm869, %v1014, %v1015
        %v1017 = vrot.slane %v960, 2
        %v1018 = vsel %vm869, %v1015, %v1017
        %v1019 = vrot.slane %v961, 2
        %v1020 = vrot.slane %v962, 2
        %v1021 = vsel %vm869, %v1019, %v1020
        %v1022 = vrot.slane %v963, 2
        %v1023 = vsel %vm869, %v1020, %v1022
        %v1024 = vrot.slane %v964, 2
        %v1025 = vrot.slane %v965, 2
        %v1026 = vsel %vm869, %v1024, %v1025
        %v1027 = vrot.slane %v966, 2
        %v1028 = vsel %vm869, %v1025, %v1027
        %v1029 = vrot.slane %v967, 2
        %v1030 = vrot.slane %v968, 2
        %v1031 = vsel %vm869, %v1029, %v1030
        %v1032 = vrot.slane %v969, 2
        %v1033 = vsel %vm869, %v1030, %v1032
        %v1050 = vadd.f32 %v926, %v996
        %v1051 = vadd.f32 %v927, %v998
        %v1052 = vadd.f32 %v928, %v1001
        %v1053 = vadd.f32 %v929, %v1003
        %v1054 = vadd.f32 %v930, %v1006
        %v1055 = vadd.f32 %v931, %v1008
        %v1056 = vadd.f32 %v932, %v1011
        %v1057 = vadd.f32 %v933, %v1013
        %v1058 = vadd.f32 %v934, %v1016
        %v1059 = vadd.f32 %v935, %v1018
        %v1060 = vadd.f32 %v936, %v1021
        %v1061 = vadd.f32 %v937, %v1023
        %v1062 = vadd.f32 %v938, %v1026
        %v1063 = vadd.f32 %v939, %v1028
        %v1064 = vadd.f32 %v940, %v1031
        %v1065 = vadd.f32 %v941, %v1033
        %v1066 = vlaneseq
        %v1067 = vshrl.u32 %v1066, 7
        %v1068 = vsub.s32 2, %v1067
        %v1069 = vrot.slane %v335, %v1068
        %v1070 = vmul.f32 %v309, %v1069
        %v1071 = vmul.f32 %v310, %v1069
        %v1072 = vmul.f32 %v311, %v1069
        %v1073 = vmul.f32 %v312, %v1069
        %v1074 = vmul.f32 %v313, %v1069
        %v1075 = vmul.f32 %v314, %v1069
        %v1076 = vmul.f32 %v315, %v1069
        %v1077 = vmul.f32 %v316, %v1069
        %v1078 = vmul.f32 %v317, %v1069
        %v1079 = vmul.f32 %v318, %v1069
        %v1080 = vmul.f32 %v319, %v1069
        %v1081 = vmul.f32 %v320, %v1069
        %v1082 = vmul.f32 %v321, %v1069
        %v1083 = vmul.f32 %v322, %v1069
        %v1084 = vmul.f32 %v323, %v1069
        %v1085 = vmul.f32 %v324, %v1069
        %v1086 = vmul.f32 %v325, %v1069
        %v1087 = vmul.f32 %v326, %v1069
        %v1088 = vmul.f32 %v327, %v1069
        %v1089 = vmul.f32 %v328, %v1069
        %v1090 = vmul.f32 %v329, %v1069
        %v1091 = vmul.f32 %v330, %v1069
        %v1092 = vmul.f32 %v331, %v1069
        %v1093 = vmul.f32 %v332, %v1069
        %v1118 = vrot.slane %v1070, 2
        %v1119 = vrot.slane %v1071, 2
        %v1120 = vsel %vm869, %v1118, %v1119
        %v1121 = vrot.slane %v1072, 2
        %v1122 = vsel %vm869, %v1119, %v1121
        %v1123 = vrot.slane %v1073, 2
        %v1124 = vrot.slane %v1074, 2
        %v1125 = vsel %vm869, %v1123, %v1124
        %v1126 = vrot.slane %v1075, 2
        %v1127 = vsel %vm869, %v1124, %v1126
        %v1128 = vrot.slane %v1076, 2
        %v1129 = vrot.slane %v1077, 2
        %v1130 = vsel %vm869, %v1128, %v1129
        %v1131 = vrot.slane %v1078, 2
        %v1132 = vsel %vm869, %v1129, %v1131
        %v1133 = vrot.slane %v1079, 2
        %v1134 = vrot.slane %v1080, 2
        %v1135 = vsel %vm869, %v1133, %v1134
        %v1136 = vrot.slane %v1081, 2
        %v1137 = vsel %vm869, %v1134, %v1136
        %v1138 = vrot.slane %v1082, 2
        %v1139 = vrot.slane %v1083, 2
        %v1140 = vsel %vm869, %v1138, %v1139
        %v1141 = vrot.slane %v1084, 2
        %v1142 = vsel %vm869, %v1139, %v1141
        %v1143 = vrot.slane %v1085, 2
        %v1144 = vrot.slane %v1086, 2
        %v1145 = vsel %vm869, %v1143, %v1144
        %v1146 = vrot.slane %v1087, 2
        %v1147 = vsel %vm869, %v1144, %v1146
        %v1148 = vrot.slane %v1088, 2
        %v1149 = vrot.slane %v1089, 2
        %v1150 = vsel %vm869, %v1148, %v1149
        %v1151 = vrot.slane %v1090, 2
        %v1152 = vsel %vm869, %v1149, %v1151
        %v1153 = vrot.slane %v1091, 2
        %v1154 = vrot.slane %v1092, 2
        %v1155 = vsel %vm869, %v1153, %v1154
        %v1156 = vrot.slane %v1093, 2
        %v1157 = vsel %vm869, %v1154, %v1156
        %v1174 = vadd.f32 %v1050, %v1120
        %v1175 = vadd.f32 %v1051, %v1122
        %v1176 = vadd.f32 %v1052, %v1125
        %v1177 = vadd.f32 %v1053, %v1127
        %v1178 = vadd.f32 %v1054, %v1130
        %v1179 = vadd.f32 %v1055, %v1132
        %v1180 = vadd.f32 %v1056, %v1135
        %v1181 = vadd.f32 %v1057, %v1137
        %v1182 = vadd.f32 %v1058, %v1140
        %v1183 = vadd.f32 %v1059, %v1142
        %v1184 = vadd.f32 %v1060, %v1145
        %v1185 = vadd.f32 %v1061, %v1147
        %v1186 = vadd.f32 %v1062, %v1150
        %v1187 = vadd.f32 %v1063, %v1152
        %v1188 = vadd.f32 %v1064, %v1155
        %v1189 = vadd.f32 %v1065, %v1157
        %v1190 = vld [vmem:[%s2] sm:$0xff]
        %v1191 = vld [vmem:[%s2 + $0x8] sm:$0xff]
        %v1192 = vld [vmem:[%s2 + $0x10] sm:$0xff]
        %v1193 = vld [vmem:[%s2 + $0x18] sm:$0xff]
        %v1194 = vld [vmem:[%s2 + $0x20] sm:$0xff]
        %v1195 = vld [vmem:[%s2 + $0x28] sm:$0xff]
        %v1196 = vld [vmem:[%s2 + $0x30] sm:$0xff]
        %v1197 = vld [vmem:[%s2 + $0x38] sm:$0xff]
        %v1198 = vld [vmem:[%s2 + $0x40] sm:$0xff]
        %v1199 = vld [vmem:[%s2 + $0x48] sm:$0xff]
        %v1200 = vld [vmem:[%s2 + $0x50] sm:$0xff]
        %v1201 = vld [vmem:[%s2 + $0x58] sm:$0xff]
        %v1202 = vld [vmem:[%s2 + $0x60] sm:$0xff]
        %v1203 = vld [vmem:[%s2 + $0x68] sm:$0xff]
        %v1204 = vld [vmem:[%s2 + $0x70] sm:$0xff]
        %v1205 = vld [vmem:[%s2 + $0x78] sm:$0xff]
        %v1206 = vld [vmem:[%s3] sm:$0x1]
        %v1208 = vlaneseq
        %v1209 = vshrl.u32 %v1208, 7
        %v1210 = vsub.s32 0, %v1209
        %v1211 = vrot.slane %v1206, %v1210
        %1213 = vmatprep.subr.mxu0 0.0
        %1214 = vmatpush1.msra.mxu0 %v1190
        %1215 = vmatprep.subr.mxu0 0.0
        %1216 = vmatpush1.msra.mxu0 %v1191
        %1217 = vmatprep.subr.mxu0 0.0
        %1218 = vmatpush1.msra.mxu0 %v1192
        %1219 = vmatprep.subr.mxu0 0.0
        %1220 = vmatpush1.msra.mxu0 %v1193
        %1221 = vmatprep.subr.mxu0 0.0
        %1222 = vmatpush1.msra.mxu0 %v1194
        %1223 = vmatprep.subr.mxu0 0.0
        %1224 = vmatpush1.msra.mxu0 %v1195
        %1225 = vmatprep.subr.mxu0 0.0
        %1226 = vmatpush1.msra.mxu0 %v1196
        %1227 = vmatprep.subr.mxu0 0.0
        %1228 = vmatpush1.msra.mxu0 %v1197
        %1229 = vmatprep.subr.mxu0 0.0
        %1230 = vmatpush1.msra.mxu0 %v1198
        %1231 = vmatprep.subr.mxu0 0.0
        %1232 = vmatpush1.msra.mxu0 %v1199
        %1233 = vmatprep.subr.mxu0 0.0
        %1234 = vmatpush1.msra.mxu0 %v1200
        %1235 = vmatprep.subr.mxu0 0.0
        %1236 = vmatpush1.msra.mxu0 %v1201
        %1237 = vmatprep.subr.mxu0 0.0
        %1238 = vmatpush1.msra.mxu0 %v1202
        %1239 = vmatprep.subr.mxu0 0.0
        %1240 = vmatpush1.msra.mxu0 %v1203
        %1241 = vmatprep.subr.mxu0 0.0
        %1242 = vmatpush1.msra.mxu0 %v1204
        %1243 = vmatprep.subr.mxu0 0.0
        %1244 = vmatpush1.msra.mxu0 %v1205
        %1245 = vmatprep.subr.mxu0 0.0
        %1246 = vmatpush1.msra.mxu0 0.0
        %1247 = vmatprep.subr.mxu0 0.0
        %1248 = vmatpush1.msra.mxu0 0.0
        %1249 = vmatprep.subr.mxu0 0.0
        %1250 = vmatpush1.msra.mxu0 0.0
        %1251 = vmatprep.subr.mxu0 0.0
        %1252 = vmatpush1.msra.mxu0 0.0
        %1253 = vmatprep.subr.mxu0 0.0
        %1254 = vmatpush1.msra.mxu0 0.0
        %1255 = vmatprep.subr.mxu0 0.0
        %1256 = vmatpush1.msra.mxu0 0.0
        %1257 = vmatprep.subr.mxu0 0.0
        %1258 = vmatpush1.msra.mxu0 0.0
        %1259 = vmatprep.subr.mxu0 0.0
        %1260 = vmatpush1.msra.mxu0 0.0
        %1261 = vmatprep.subr.mxu0 0.0
        %1262 = vmatpush1.msra.mxu0 0.0
        %1263 = vmatprep.subr.mxu0 0.0
        %1264 = vmatpush1.msra.mxu0 0.0
        %1265 = vmatprep.subr.mxu0 0.0
        %1266 = vmatpush1.msra.mxu0 0.0
        %1267 = vmatprep.subr.mxu0 0.0
        %1268 = vmatpush1.msra.mxu0 0.0
        %1269 = vmatprep.subr.mxu0 0.0
        %1270 = vmatpush1.msra.mxu0 0.0
        %1271 = vmatprep.subr.mxu0 0.0
        %1272 = vmatpush1.msra.mxu0 0.0
        %1273 = vmatprep.subr.mxu0 0.0
        %1274 = vmatpush1.msra.mxu0 0.0
        %1275 = vmatprep.subr.mxu0 0.0
        %1276 = vmatpush1.msra.mxu0 0.0
        %1277 = vmatprep.mubr.f32.mxu0 0.0
        %1278 = vmatmul.mubr.f32.gmra.mrb[0].mxu0 %v1174
        %v1279 = vpop.f32.mrb[0].mxu0
        %v1280 = vadd.f32 %v1211, %v1279
        %v1281 = vpop.f32.mrb[0].mxu0
        %1282 = vmatprep.mubr.f32.mxu0 0.0
        %1283 = vmatmul.mubr.f32.gmra.mrb[0].mxu0 %v1175
        %v1284 = vpop.f32.mrb[0].mxu0
        %v1285 = vadd.f32 %v1211, %v1284
        %v1286 = vpop.f32.mrb[0].mxu0
        %1287 = vmatprep.mubr.f32.mxu0 0.0
        %1288 = vmatmul.mubr.f32.gmra.mrb[0].mxu0 %v1176
        %v1289 = vpop.f32.mrb[0].mxu0
        %v1290 = vadd.f32 %v1211, %v1289
        %v1291 = vpop.f32.mrb[0].mxu0
        %1292 = vmatprep.mubr.f32.mxu0 0.0
        %1293 = vmatmul.mubr.f32.gmra.mrb[0].mxu0 %v1177
        %v1294 = vpop.f32.mrb[0].mxu0
        %v1295 = vadd.f32 %v1211, %v1294
        %v1296 = vpop.f32.mrb[0].mxu0
        %1297 = vmatprep.mubr.f32.mxu0 0.0
        %1298 = vmatmul.mubr.f32.gmra.mrb[0].mxu0 %v1178
        %v1299 = vpop.f32.mrb[0].mxu0
        %v1300 = vadd.f32 %v1211, %v1299
        %v1301 = vpop.f32.mrb[0].mxu0
        %1302 = vmatprep.mubr.f32.mxu0 0.0
        %1303 = vmatmul.mubr.f32.gmra.mrb[0].mxu0 %v1179
        %v1304 = vpop.f32.mrb[0].mxu0
        %v1305 = vadd.f32 %v1211, %v1304
        %v1306 = vpop.f32.mrb[0].mxu0
        %1307 = vmatprep.mubr.f32.mxu0 0.0
        %1308 = vmatmul.mubr.f32.gmra.mrb[0].mxu0 %v1180
        %v1309 = vpop.f32.mrb[0].mxu0
        %v1310 = vadd.f32 %v1211, %v1309
        %v1311 = vpop.f32.mrb[0].mxu0
        %1312 = vmatprep.mubr.f32.mxu0 0.0
        %1313 = vmatmul.mubr.f32.gmra.mrb[0].mxu0 %v1181
        %v1314 = vpop.f32.mrb[0].mxu0
        %v1315 = vadd.f32 %v1211, %v1314
        %v1316 = vpop.f32.mrb[0].mxu0
        %1317 = vmatprep.mubr.f32.mxu0 0.0
        %1318 = vmatmul.mubr.f32.gmra.mrb[0].mxu0 %v1182
        %v1319 = vpop.f32.mrb[0].mxu0
        %v1320 = vadd.f32 %v1211, %v1319
        %v1321 = vpop.f32.mrb[0].mxu0
        %1322 = vmatprep.mubr.f32.mxu0 0.0
        %1323 = vmatmul.mubr.f32.gmra.mrb[0].mxu0 %v1183
        %v1324 = vpop.f32.mrb[0].mxu0
        %v1325 = vadd.f32 %v1211, %v1324
        %v1326 = vpop.f32.mrb[0].mxu0
        %1327 = vmatprep.mubr.f32.mxu0 0.0
        %1328 = vmatmul.mubr.f32.gmra.mrb[0].mxu0 %v1184
        %v1329 = vpop.f32.mrb[0].mxu0
        %v1330 = vadd.f32 %v1211, %v1329
        %v1331 = vpop.f32.mrb[0].mxu0
        %1332 = vmatprep.mubr.f32.mxu0 0.0
        %1333 = vmatmul.mubr.f32.gmra.mrb[0].mxu0 %v1185
        %v1334 = vpop.f32.mrb[0].mxu0
        %v1335 = vadd.f32 %v1211, %v1334
        %v1336 = vpop.f32.mrb[0].mxu0
        %1337 = vmatprep.mubr.f32.mxu0 0.0
        %1338 = vmatmul.mubr.f32.gmra.mrb[0].mxu0 %v1186
        %v1339 = vpop.f32.mrb[0].mxu0
        %v1340 = vadd.f32 %v1211, %v1339
        %v1341 = vpop.f32.mrb[0].mxu0
        %1342 = vmatprep.mubr.f32.mxu0 0.0
        %1343 = vmatmul.mubr.f32.gmra.mrb[0].mxu0 %v1187
        %v1344 = vpop.f32.mrb[0].mxu0
        %v1345 = vadd.f32 %v1211, %v1344
        %v1346 = vpop.f32.mrb[0].mxu0
        %1347 = vmatprep.mubr.f32.mxu0 0.0
        %1348 = vmatmul.mubr.f32.gmra.mrb[0].mxu0 %v1188
        %v1349 = vpop.f32.mrb[0].mxu0
        %v1350 = vadd.f32 %v1211, %v1349
        %v1351 = vpop.f32.mrb[0].mxu0
        %1352 = vmatprep.mubr.f32.mxu0 0.0
        %1353 = vmatmul.mubr.f32.gmra.mrb[0].mxu0 %v1189
        %v1354 = vpop.f32.mrb[0].mxu0
        %v1355 = vadd.f32 %v1211, %v1354
        %v1356 = vpop.f32.mrb[0].mxu0
        %1357 = vdwg.mxu0
        %1358 = vst [vmem:[%s163] sm:$0xff] %v1280
        %1359 = vst [vmem:[%s163 + $0x8] sm:$0xff] %v1285
        %1360 = vst [vmem:[%s163 + $0x10] sm:$0xff] %v1290
        %1361 = vst [vmem:[%s163 + $0x18] sm:$0xff] %v1295
        %1362 = vst [vmem:[%s163 + $0x20] sm:$0xff] %v1300
        %1363 = vst [vmem:[%s163 + $0x28] sm:$0xff] %v1305
        %1364 = vst [vmem:[%s163 + $0x30] sm:$0xff] %v1310
        %1365 = vst [vmem:[%s163 + $0x38] sm:$0xff] %v1315
        %1366 = vst [vmem:[%s163 + $0x40] sm:$0xff] %v1320
        %1367 = vst [vmem:[%s163 + $0x48] sm:$0xff] %v1325
        %1368 = vst [vmem:[%s163 + $0x50] sm:$0xff] %v1330
        %1369 = vst [vmem:[%s163 + $0x58] sm:$0xff] %v1335
        %1370 = vst [vmem:[%s163 + $0x60] sm:$0xff] %v1340
        %1371 = vst [vmem:[%s163 + $0x68] sm:$0xff] %v1345
        %1372 = vst [vmem:[%s163 + $0x70] sm:$0xff] %v1350
        %1373 = vst [vmem:[%s163 + $0x78] sm:$0xff] %v1355
        %s1374 = sand.u32 %s103, 1
        %s1375 = scalar_lea.sflag [#allocation5], %s1374
        %s1376 = sand.u32 %s103, 1
        %s1377 = smul.addr %s1376, 128
        %s1378 = scalar_lea.vmem [#allocation4], %s1377
        // Predicated region
        $region70: #{tpu_custom_call.1} parent=31 // pred_check
          %p1379 = pneg %p113
        $region71: #{tpu_custom_call.1} parent=31 // pred_check_branch
          %1381 = sbr.rel (%p1379) target = $region73
        $region72: #{tpu_custom_call.1} parent=31 // pred_region
          %s1382 = smul.u32 8, %s23
          %s1384 = ssub.s32 2048, 2048
          %1385 = vsyncadd %s1375, %s1384
          %s1386 = smul.addr %s1382, 2
          %s1387 = smul.addr %s22, 32
          %s1388 = sadd.s32 %s1386, %s1387
          %s1389 = smul.addr %s1388, 128
          %s1390 = scalar_lea.hbm %s4, %s1389
          %s1391 = sshll.u32 %s1378, 4
          %s1392 = int_to_ptr.vmem [resolvable:$true] %s1391
          %1397 = dma.vmem_to_hbm [thread:$0]  %s1392, 2048, %s1390, %s1375, 128, 128, 8
        $region73: #{tpu_custom_call.1} parent=31 // pred_fallthru
          _
      $region32: #{tpu_custom_call.1} parent=5 // pred_fallthru
        _
      %p1398 = scmp.le.s32.totalorder 2, %s13
      // Predicated region
      $region74: #{tpu_custom_call.1} parent=5 // pred_check
        %p1399 = pneg %p1398
      $region75: #{tpu_custom_call.1} parent=5 // pred_check_branch
        %1401 = sbr.rel (%p1399) target = $region77
      $region76: #{tpu_custom_call.1} parent=5 // pred_region
        %s1402 = ssub.s32 %s13, 2
        // Predicated region
        $region78: #{tpu_custom_call.1} parent=76 // pred_check
          %p1403 = pneg %p119
        $region79: #{tpu_custom_call.1} parent=76 // pred_check_branch
          %1405 = sbr.rel (%p1403) target = $region81
        $region80: #{tpu_custom_call.1} parent=76 // pred_region
          %s1406 = sand.u32 %s104, 1
          %s1407 = scalar_lea.sflag [#allocation5], %s1406
          %s1408 = sand.u32 %s104, 1
          %s1409 = smul.addr %s1408, 128
          %s1410 = scalar_lea.vmem [#allocation4], %s1409
          %1411 = dma.done %s1407, 2048
        $region81: #{tpu_custom_call.1} parent=76 // pred_fallthru
          _
      $region77: #{tpu_custom_call.1} parent=5 // pred_fallthru
        _
    $region6: #{tpu_custom_call.1} parent=1 // loop_footer
      %s17 = sadd.s32 1, %s13
    $region7: #{tpu_custom_call.1} parent=1 // loop_footer_branch
      %12 = sbr.rel target = $region3
    $region8: #{tpu_custom_call.1} parent=1 // loop_exit
      _
    %1412 = vsyncpa [#allocation5], 1
    %s1413 = scalar_lea.sflag [#allocation5], 1
    %1414 = vsyncpa %s1413, 1
  %1415 = vsyncmov [#allocation3]
  %s1416 = vpop.sfrf %1415
  %p1417 = scmp.eq.s32.totalorder %s1416, 0
  %p1418 = pneg %p1417
  %1420 = shalt.err (%p1418)

</llo_original>
